<compile_context>
chip_gen: v7x
topology: tpu7x:2x2x1
jax: 0.10.0
libtpu: 0.0.40
codegen_flags: <defaults>
</compile_context>

<pallas_src>
import functools

import jax
import jax.numpy as jnp
from jax.experimental import pallas as pl
from jax.experimental.pallas import tpu as pltpu

# Explicit scoped-VMEM budget: well above what the tiles below need, and at or
# below physical VMEM on every generation (v7x 64 MiB, v5e/v6e 128 MiB).
VMEM_LIMIT_BYTES = 64 * 1024 * 1024


def _round_up(n, m):
    return ((n + m - 1) // m) * m


# ---------------------------------------------------------------------------
# Pallas kernels
# ---------------------------------------------------------------------------
def _conv_relu_pool_kernel(w_ref, cols_ref, o_ref):
    """o = maxpool2x2(relu(W @ cols)), bias folded into a ones-row of cols.

    cols_ref block is (4, Kp, Tg): four 2x2 pool-offset groups, each a
    lane-dense (Kp, Tg) patch tile.  The pool is an elementwise max of the
    four matmul results (relu(max) == max(relu))."""
    w = w_ref[...]
    y0 = jnp.dot(w, cols_ref[0], preferred_element_type=jnp.float32)
    y1 = jnp.dot(w, cols_ref[1], preferred_element_type=jnp.float32)
    y2 = jnp.dot(w, cols_ref[2], preferred_element_type=jnp.float32)
    y3 = jnp.dot(w, cols_ref[3], preferred_element_type=jnp.float32)
    y = jnp.maximum(jnp.maximum(y0, y1), jnp.maximum(y2, y3))
    o_ref[...] = jnp.maximum(y, 0.0).astype(o_ref.dtype)


def conv_relu_pool(wmat, cols, tile_g):
    """Fused conv-as-matmul + bias + ReLU + 2x2 max-pool.

    wmat: (OCp, Kp) with bias folded into column K.  cols: (4, Kp, Gp) with a
    ones row at K (valid columns only).  Output: (OCp, Gp), tiled over the
    pooled-pixel lane axis in Tg-wide blocks (weights stay VMEM-resident)."""
    ocp, kp_ = wmat.shape
    four, kp2, gp = cols.shape
    assert four == 4 and kp2 == kp_ and gp % tile_g == 0 and tile_g % 128 == 0
    grid = (gp // tile_g,)
    itemsize = cols.dtype.itemsize
    flops = 8 * ocp * kp_ * gp + 4 * ocp * gp
    bytes_accessed = (wmat.size + cols.size + ocp * gp) * itemsize
    return pl.pallas_call(
        _conv_relu_pool_kernel,
        out_shape=jax.ShapeDtypeStruct((ocp, gp), cols.dtype),
        grid=grid,
        in_specs=[
            pl.BlockSpec((ocp, kp_), lambda i: (0, 0)),          # resident weights
            pl.BlockSpec((4, kp_, tile_g), lambda i: (0, 0, i)),  # streamed patches
        ],
        out_specs=pl.BlockSpec((ocp, tile_g), lambda i: (0, i)),
        cost_estimate=pl.CostEstimate(flops=flops, transcendentals=0,
                                      bytes_accessed=bytes_accessed),
        compiler_params=pltpu.CompilerParams(
            dimension_semantics=("parallel",),
            vmem_limit_bytes=VMEM_LIMIT_BYTES),
    )(wmat, cols)


def _fc_stack_kernel(x_ref, w1_ref, w2_ref, w3_ref, o_ref):
    """Fully fused fc1+ReLU -> fc2+ReLU -> fc3; biases folded into the padded
    contraction rows (a 1.0 carry column is threaded through the stack)."""
    dt = w1_ref.dtype
    h = jnp.dot(x_ref[...], w1_ref[...], preferred_element_type=jnp.float32)
    h = jnp.maximum(h, 0.0).astype(dt)
    h = jnp.dot(h, w2_ref[...], preferred_element_type=jnp.float32)
    h = jnp.maximum(h, 0.0).astype(dt)
    o = jnp.dot(h, w3_ref[...], preferred_element_type=jnp.float32)
    o_ref[...] = o.astype(o_ref.dtype)


def fc_stack(x, w1, w2, w3, tile_n):
    """x: (Np, 512) (bias carry col at 400), weights padded to lane-dense
    (512,128)/(128,128)/(128,128).  Tiled over the batch axis; weights stay
    VMEM-resident."""
    n_pad, kin = x.shape
    assert n_pad % tile_n == 0
    nout = w3.shape[1]
    grid = (n_pad // tile_n,)
    flops = 2 * n_pad * (w1.shape[0] * w1.shape[1] + w2.shape[0] * w2.shape[1]
                         + w3.shape[0] * w3.shape[1])
    bytes_accessed = (x.size * x.dtype.itemsize
                      + (w1.size + w2.size + w3.size) * w1.dtype.itemsize
                      + n_pad * nout * 4)
    return pl.pallas_call(
        _fc_stack_kernel,
        out_shape=jax.ShapeDtypeStruct((n_pad, nout), jnp.float32),
        grid=grid,
        in_specs=[
            pl.BlockSpec((tile_n, kin), lambda i: (i, 0)),
            pl.BlockSpec(w1.shape, lambda i: (0, 0)),
            pl.BlockSpec(w2.shape, lambda i: (0, 0)),
            pl.BlockSpec(w3.shape, lambda i: (0, 0)),
        ],
        out_specs=pl.BlockSpec((tile_n, nout), lambda i: (i, 0)),
        cost_estimate=pl.CostEstimate(flops=flops, transcendentals=0,
                                      bytes_accessed=bytes_accessed),
        compiler_params=pltpu.CompilerParams(
            dimension_semantics=("parallel",),
            vmem_limit_bytes=VMEM_LIMIT_BYTES),
    )(x, w1, w2, w3)


# ---------------------------------------------------------------------------
# Plain-JAX glue (patch extraction / padding / parameter prep)
# ---------------------------------------------------------------------------
def im2col_pool_groups(x_cnhw, kh, kw, k_pad, g_pad):
    """Channel-major (C, N, H, W) -> (4, k_pad, g_pad) pool-grouped patches.

    Group index = pool offset (di, dj).  Rows: c*kh*kw + ki*kw + kj (matches
    torch weight.reshape(OC, C*KH*KW)), then one ones-row at index k (bias
    fold, valid columns only), zero-padded to k_pad.  Columns: n*PH*PW + i*PW
    + j for pooled output pixel (n, i, j), zero-padded to g_pad."""
    c, n, h, w = x_cnhw.shape
    oh, ow = h - kh + 1, w - kw + 1          # valid-conv output spatial (even)
    ph, pw = oh // 2, ow // 2                # pooled output spatial
    k = c * kh * kw
    g = n * ph * pw
    pats = jnp.stack([x_cnhw[:, :, i:i + oh, j:j + ow]
                      for i in range(kh) for j in range(kw)], axis=1)   # (C, kh*kw, N, OH, OW)
    pats = pats.reshape(k, n, ph, 2, pw, 2)    # oh = 2*i + di, ow = 2*j + dj
    pats = pats.transpose(3, 5, 0, 1, 2, 4)    # (di, dj, K, N, PH, PW)
    pats = pats.reshape(4, k, g)
    ones = jnp.ones((4, 1, g), pats.dtype)     # bias row (only for valid cols)
    pats = jnp.concatenate([pats, ones], axis=1)
    return jnp.pad(pats, ((0, 0), (0, k_pad - (k + 1)), (0, g_pad - g)))


def init_params(key):
    """Deterministic init mimicking PyTorch defaults: U(-1/sqrt(fan_in), +)."""
    def uni(k, shape, fan_in):
        bound = 1.0 / float(fan_in) ** 0.5
        return jax.random.uniform(k, shape, jnp.float32, -bound, bound)

    ks = jax.random.split(key, 10)
    return {
        "conv1_w": uni(ks[0], (6, 3, 5, 5), 3 * 25),
        "conv1_b": uni(ks[1], (6,), 3 * 25),
        "conv2_w": uni(ks[2], (16, 6, 5, 5), 6 * 25),
        "conv2_b": uni(ks[3], (16,), 6 * 25),
        "fc1_w": uni(ks[4], (120, 400), 400),
        "fc1_b": uni(ks[5], (120,), 400),
        "fc2_w": uni(ks[6], (84, 120), 120),
        "fc2_b": uni(ks[7], (84,), 120),
        "fc3_w": uni(ks[8], (10, 84), 84),
        "fc3_b": uni(ks[9], (10,), 84),
    }


def prepare_params(p, dtype=jnp.float32):
    """One-time padding / transposition / bias-folding into kernel layouts."""
    def conv_w(w, b, oc_pad, k_pad):
        oc = w.shape[0]
        k = w.shape[1] * w.shape[2] * w.shape[3]
        m = jnp.concatenate([w.reshape(oc, k), b[:, None]], axis=1)   # bias col at k
        m = jnp.pad(m, ((0, oc_pad - oc), (0, k_pad - (k + 1))))
        return m.astype(dtype)

    def fc_w(w, b, in_pad, out_pad, carry_col=None):
        wt = w.T                                                      # (in, out)
        in_d, out_d = wt.shape
        m = jnp.concatenate([wt, b[None, :]], axis=0)                 # bias row at in_d
        m = jnp.pad(m, ((0, in_pad - (in_d + 1)), (0, out_pad - out_d)))
        if carry_col is not None:
            m = m.at[in_d, carry_col].set(1.0)   # propagate the 1.0 carry column
        return m.astype(dtype)

    # K pads: 76->80 and 151->160 (sublane multiples for f32 *and* bf16),
    # instead of the old 128/256 — cuts the dominant cols HBM stream ~40%.
    return {
        "conv1_w": conv_w(p["conv1_w"], p["conv1_b"], 16, 80),
        "conv2_w": conv_w(p["conv2_w"], p["conv2_b"], 16, 160),
        "fc1_w": fc_w(p["fc1_w"], p["fc1_b"], 512, 128, carry_col=120),
        "fc2_w": fc_w(p["fc2_w"], p["fc2_b"], 128, 128, carry_col=84),
        "fc3_w": fc_w(p["fc3_w"], p["fc3_b"], 128, 128),
    }


def net_forward(x_nchw, kp, compute_dtype=jnp.float32,
                conv_tile_g=2048, fc_tile_n=256):
    n = x_nchw.shape[0]
    x = x_nchw.astype(compute_dtype).transpose(1, 0, 2, 3)    # (3, N, 32, 32) channel-major

    # conv1 + bias + ReLU + 2x2 max-pool (single fused kernel, lane-tiled grid)
    g1 = n * 14 * 14
    tg1 = min(conv_tile_g, _round_up(g1, 128))
    g1p = _round_up(g1, tg1)
    cols1 = im2col_pool_groups(x, 5, 5, k_pad=80, g_pad=g1p)          # (4, 80, g1p)
    y1 = conv_relu_pool(kp["conv1_w"], cols1, tg1)                    # (16, g1p)
    a1 = y1[:6, :g1].reshape(6, n, 14, 14)                            # stay channel-major

    # conv2 + bias + ReLU + 2x2 max-pool
    g2 = n * 5 * 5
    tg2 = min(conv_tile_g, _round_up(g2, 128))
    g2p = _round_up(g2, tg2)
    cols2 = im2col_pool_groups(a1, 5, 5, k_pad=160, g_pad=g2p)        # (4, 160, g2p)
    y2 = conv_relu_pool(kp["conv2_w"], cols2, tg2)                    # (16, g2p)
    a2 = y2[:, :g2].reshape(16, n, 5, 5)

    # flatten in torch .view(-1, 16*5*5) order, append bias-carry column, pad
    flat = a2.transpose(1, 0, 2, 3).reshape(n, 400)
    flat = jnp.concatenate([flat, jnp.ones((n, 1), flat.dtype)], axis=1)  # col 400 = 1.0
    tn = min(fc_tile_n, _round_up(n, 16))
    n_pad = _round_up(n, tn)
    flat = jnp.pad(flat, ((0, n_pad - n), (0, 512 - 401)))

    # fused fc1 -> fc2 -> fc3 (single kernel, batch-tiled); slice padded logits
    logits = fc_stack(flat, kp["fc1_w"], kp["fc2_w"], kp["fc3_w"], tn)  # (n_pad, 128) f32
    return logits[:n, :10]


def reference_forward(x, p):
    """Pure-JAX f32 reference for correctness check (matches the torch module)."""
    def conv(x, w, b):
        y = jax.lax.conv_general_dilated(
            x, w, (1, 1), "VALID", dimension_numbers=("NCHW", "OIHW", "NCHW"))
        return jax.nn.relu(y + b[None, :, None, None])

    def pool(x):
        n, c, h, w = x.shape
        return x.reshape(n, c, h // 2, 2, w // 2, 2).max(axis=(3, 5))

    x = pool(conv(x, p["conv1_w"], p["conv1_b"]))
    x = pool(conv(x, p["conv2_w"], p["conv2_b"]))
    x = x.reshape(x.shape[0], 400)
    x = jax.nn.relu(x @ p["fc1_w"].T + p["fc1_b"])
    x = jax.nn.relu(x @ p["fc2_w"].T + p["fc2_b"])
    return x @ p["fc3_w"].T + p["fc3_b"]


if __name__ == "__main__":
    key = jax.random.PRNGKey(0)
    kx, kparam = jax.random.split(key)

    # Architecture requires 32x32 spatial input (so that flatten == 16*5*5).
    x = jax.random.normal(kx, (2, 3, 32, 32), jnp.float32)   # batch=2, NCHW
    params = init_params(kparam)
    ref = reference_forward(x, params)

    # --- f32 path: strict parity check -------------------------------------
    kp32 = prepare_params(params, jnp.float32)
    fwd32 = jax.jit(functools.partial(net_forward, compute_dtype=jnp.float32))
    out32 = jax.block_until_ready(fwd32(x, kp32))
    assert out32.shape == (2, 10), out32.shape
    assert jnp.allclose(out32, ref, atol=1e-3, rtol=1e-3), "f32 mismatch vs reference"

    # --- bf16 operand path (f32 MXU accumulate): halves HBM bytes -----------
    kp16 = prepare_params(params, jnp.bfloat16)
    fwd16 = jax.jit(functools.partial(net_forward, compute_dtype=jnp.bfloat16))
    out16 = jax.block_until_ready(fwd16(x, kp16))
    assert out16.shape == (2, 10), out16.shape
    assert float(jnp.max(jnp.abs(out16 - ref))) < 0.25, "bf16 path diverged"

    print("KERNEL_OK")
</pallas_src>

<mosaic_0001>
module attributes {stable_mosaic.version = 11 : i64} {
  func.func @_conv_relu_pool_kernel(%arg0: i32, %arg1: memref<16x80xf32, #tpu.memory_space<vmem>>, %arg2: memref<4x80x512xf32, #tpu.memory_space<vmem>>, %arg3: memref<16x512xf32, #tpu.memory_space<vmem>>) attributes {dimension_semantics = [#tpu.dimension_semantics<parallel>], iteration_bounds = array<i64: 1>, scalar_prefetch = 0 : i64, scratch_operands = 0 : i64, tpu.core_type = #tpu.core_type<tc>, window_params = [{pipeline_mode = #tpu.pipeline_mode<synchronous>, transform_indices = @transform_0, window_bounds = array<i64: 16, 80>}, {transform_indices = @transform_1, window_bounds = array<i64: 4, 80, 512>}, {transform_indices = @transform_2, window_bounds = array<i64: 16, 512>}]} {
    %c0 = arith.constant 0 : index
    %c0_0 = arith.constant 0 : index
    %0 = vector.load %arg1[%c0, %c0_0] : memref<16x80xf32, #tpu.memory_space<vmem>>, vector<16x80xf32>
    %c0_1 = arith.constant 0 : index
    %c0_2 = arith.constant 0 : index
    %c0_3 = arith.constant 0 : index
    %1 = vector.load %arg2[%c0_1, %c0_2, %c0_3] : memref<4x80x512xf32, #tpu.memory_space<vmem>>, vector<1x80x512xf32>
    %2 = vector.shape_cast %1 : vector<1x80x512xf32> to vector<80x512xf32>
    %cst = arith.constant dense<0.000000e+00> : vector<16x512xf32>
    %3 = tpu.matmul %0, %2, %cst {dimension_numbers = #tpu.dot_dimension_numbers<[1], [0], [0], [1], [0, 0, 1, 1], [], []>} : vector<16x80xf32>, vector<80x512xf32>, vector<16x512xf32> -> vector<16x512xf32>
    %c1 = arith.constant 1 : index
    %c0_4 = arith.constant 0 : index
    %c0_5 = arith.constant 0 : index
    %4 = vector.load %arg2[%c1, %c0_4, %c0_5] : memref<4x80x512xf32, #tpu.memory_space<vmem>>, vector<1x80x512xf32>
    %5 = vector.shape_cast %4 : vector<1x80x512xf32> to vector<80x512xf32>
    %cst_6 = arith.constant dense<0.000000e+00> : vector<16x512xf32>
    %6 = tpu.matmul %0, %5, %cst_6 {dimension_numbers = #tpu.dot_dimension_numbers<[1], [0], [0], [1], [0, 0, 1, 1], [], []>} : vector<16x80xf32>, vector<80x512xf32>, vector<16x512xf32> -> vector<16x512xf32>
    %c2 = arith.constant 2 : index
    %c0_7 = arith.constant 0 : index
    %c0_8 = arith.constant 0 : index
    %7 = vector.load %arg2[%c2, %c0_7, %c0_8] : memref<4x80x512xf32, #tpu.memory_space<vmem>>, vector<1x80x512xf32>
    %8 = vector.shape_cast %7 : vector<1x80x512xf32> to vector<80x512xf32>
    %cst_9 = arith.constant dense<0.000000e+00> : vector<16x512xf32>
    %9 = tpu.matmul %0, %8, %cst_9 {dimension_numbers = #tpu.dot_dimension_numbers<[1], [0], [0], [1], [0, 0, 1, 1], [], []>} : vector<16x80xf32>, vector<80x512xf32>, vector<16x512xf32> -> vector<16x512xf32>
    %c3 = arith.constant 3 : index
    %c0_10 = arith.constant 0 : index
    %c0_11 = arith.constant 0 : index
    %10 = vector.load %arg2[%c3, %c0_10, %c0_11] : memref<4x80x512xf32, #tpu.memory_space<vmem>>, vector<1x80x512xf32>
    %11 = vector.shape_cast %10 : vector<1x80x512xf32> to vector<80x512xf32>
    %cst_12 = arith.constant dense<0.000000e+00> : vector<16x512xf32>
    %12 = tpu.matmul %0, %11, %cst_12 {dimension_numbers = #tpu.dot_dimension_numbers<[1], [0], [0], [1], [0, 0, 1, 1], [], []>} : vector<16x80xf32>, vector<80x512xf32>, vector<16x512xf32> -> vector<16x512xf32>
    %13 = arith.maximumf %3, %6 : vector<16x512xf32>
    %14 = arith.maximumf %9, %12 : vector<16x512xf32>
    %15 = arith.maximumf %13, %14 : vector<16x512xf32>
    %cst_13 = arith.constant 0.000000e+00 : f32
    %16 = vector.broadcast %cst_13 : f32 to vector<16x512xf32>
    %17 = arith.maximumf %15, %16 : vector<16x512xf32>
    %c0_14 = arith.constant 0 : index
    %c0_15 = arith.constant 0 : index
    %18 = vector.load %arg3[%c0_14, %c0_15] : memref<16x512xf32, #tpu.memory_space<vmem>>, vector<16x512xf32>
    tpu.vector_store %arg3[%c0_14, %c0_15], %17 {strides = array<i32>} : memref<16x512xf32, #tpu.memory_space<vmem>>, vector<16x512xf32>,
    return
  }
  func.func @transform_0(%arg0: i32) -> (i32, i32) {
    %c0_i32 = arith.constant 0 : i32
    %c0_i32_0 = arith.constant 0 : i32
    %c0_i32_1 = arith.constant 0 : i32
    return %c0_i32, %c0_i32_0 : i32, i32
  }
  func.func @transform_1(%arg0: i32) -> (i32, i32, i32) {
    %c0_i32 = arith.constant 0 : i32
    %c0_i32_0 = arith.constant 0 : i32
    %c0_i32_1 = arith.constant 0 : i32
    return %c0_i32, %c0_i32_0, %arg0 : i32, i32, i32
  }
  func.func @transform_2(%arg0: i32) -> (i32, i32) {
    %c0_i32 = arith.constant 0 : i32
    %c0_i32_0 = arith.constant 0 : i32
    return %c0_i32, %arg0 : i32, i32
  }
}

module attributes {stable_mosaic.version = 11 : i64} {
  func.func @_conv_relu_pool_kernel(%arg0: i32, %arg1: memref<16x160xf32, #tpu.memory_space<vmem>>, %arg2: memref<4x160x128xf32, #tpu.memory_space<vmem>>, %arg3: memref<16x128xf32, #tpu.memory_space<vmem>>) attributes {dimension_semantics = [#tpu.dimension_semantics<parallel>], iteration_bounds = array<i64: 1>, scalar_prefetch = 0 : i64, scratch_operands = 0 : i64, tpu.core_type = #tpu.core_type<tc>, window_params = [{pipeline_mode = #tpu.pipeline_mode<synchronous>, transform_indices = @transform_0, window_bounds = array<i64: 16, 160>}, {transform_indices = @transform_1, window_bounds = array<i64: 4, 160, 128>}, {transform_indices = @transform_2, window_bounds = array<i64: 16, 128>}]} {
    %c0 = arith.constant 0 : index
    %c0_0 = arith.constant 0 : index
    %0 = vector.load %arg1[%c0, %c0_0] : memref<16x160xf32, #tpu.memory_space<vmem>>, vector<16x160xf32>
    %c0_1 = arith.constant 0 : index
    %c0_2 = arith.constant 0 : index
    %c0_3 = arith.constant 0 : index
    %1 = vector.load %arg2[%c0_1, %c0_2, %c0_3] : memref<4x160x128xf32, #tpu.memory_space<vmem>>, vector<1x160x128xf32>
    %2 = vector.shape_cast %1 : vector<1x160x128xf32> to vector<160x128xf32>
    %cst = arith.constant dense<0.000000e+00> : vector<16x128xf32>
    %3 = tpu.matmul %0, %2, %cst {dimension_numbers = #tpu.dot_dimension_numbers<[1], [0], [0], [1], [0, 0, 1, 1], [], []>} : vector<16x160xf32>, vector<160x128xf32>, vector<16x128xf32> -> vector<16x128xf32>
    %c1 = arith.constant 1 : index
    %c0_4 = arith.constant 0 : index
    %c0_5 = arith.constant 0 : index
    %4 = vector.load %arg2[%c1, %c0_4, %c0_5] : memref<4x160x128xf32, #tpu.memory_space<vmem>>, vector<1x160x128xf32>
    %5 = vector.shape_cast %4 : vector<1x160x128xf32> to vector<160x128xf32>
    %cst_6 = arith.constant dense<0.000000e+00> : vector<16x128xf32>
    %6 = tpu.matmul %0, %5, %cst_6 {dimension_numbers = #tpu.dot_dimension_numbers<[1], [0], [0], [1], [0, 0, 1, 1], [], []>} : vector<16x160xf32>, vector<160x128xf32>, vector<16x128xf32> -> vector<16x128xf32>
    %c2 = arith.constant 2 : index
    %c0_7 = arith.constant 0 : index
    %c0_8 = arith.constant 0 : index
    %7 = vector.load %arg2[%c2, %c0_7, %c0_8] : memref<4x160x128xf32, #tpu.memory_space<vmem>>, vector<1x160x128xf32>
    %8 = vector.shape_cast %7 : vector<1x160x128xf32> to vector<160x128xf32>
    %cst_9 = arith.constant dense<0.000000e+00> : vector<16x128xf32>
    %9 = tpu.matmul %0, %8, %cst_9 {dimension_numbers = #tpu.dot_dimension_numbers<[1], [0], [0], [1], [0, 0, 1, 1], [], []>} : vector<16x160xf32>, vector<160x128xf32>, vector<16x128xf32> -> vector<16x128xf32>
    %c3 = arith.constant 3 : index
    %c0_10 = arith.constant 0 : index
    %c0_11 = arith.constant 0 : index
    %10 = vector.load %arg2[%c3, %c0_10, %c0_11] : memref<4x160x128xf32, #tpu.memory_space<vmem>>, vector<1x160x128xf32>
    %11 = vector.shape_cast %10 : vector<1x160x128xf32> to vector<160x128xf32>
    %cst_12 = arith.constant dense<0.000000e+00> : vector<16x128xf32>
    %12 = tpu.matmul %0, %11, %cst_12 {dimension_numbers = #tpu.dot_dimension_numbers<[1], [0], [0], [1], [0, 0, 1, 1], [], []>} : vector<16x160xf32>, vector<160x128xf32>, vector<16x128xf32> -> vector<16x128xf32>
    %13 = arith.maximumf %3, %6 : vector<16x128xf32>
    %14 = arith.maximumf %9, %12 : vector<16x128xf32>
    %15 = arith.maximumf %13, %14 : vector<16x128xf32>
    %cst_13 = arith.constant 0.000000e+00 : f32
    %16 = vector.broadcast %cst_13 : f32 to vector<16x128xf32>
    %17 = arith.maximumf %15, %16 : vector<16x128xf32>
    %c0_14 = arith.constant 0 : index
    %c0_15 = arith.constant 0 : index
    %18 = vector.load %arg3[%c0_14, %c0_15] : memref<16x128xf32, #tpu.memory_space<vmem>>, vector<16x128xf32>
    tpu.vector_store %arg3[%c0_14, %c0_15], %17 {strides = array<i32>} : memref<16x128xf32, #tpu.memory_space<vmem>>, vector<16x128xf32>,
    return
  }
  func.func @transform_0(%arg0: i32) -> (i32, i32) {
    %c0_i32 = arith.constant 0 : i32
    %c0_i32_0 = arith.constant 0 : i32
    %c0_i32_1 = arith.constant 0 : i32
    return %c0_i32, %c0_i32_0 : i32, i32
  }
  func.func @transform_1(%arg0: i32) -> (i32, i32, i32) {
    %c0_i32 = arith.constant 0 : i32
    %c0_i32_0 = arith.constant 0 : i32
    %c0_i32_1 = arith.constant 0 : i32
    return %c0_i32, %c0_i32_0, %arg0 : i32, i32, i32
  }
  func.func @transform_2(%arg0: i32) -> (i32, i32) {
    %c0_i32 = arith.constant 0 : i32
    %c0_i32_0 = arith.constant 0 : i32
    return %c0_i32, %arg0 : i32, i32
  }
}

module attributes {stable_mosaic.version = 11 : i64} {
  func.func @_fc_stack_kernel(%arg0: i32, %arg1: memref<16x512xf32, #tpu.memory_space<vmem>>, %arg2: memref<512x128xf32, #tpu.memory_space<vmem>>, %arg3: memref<128x128xf32, #tpu.memory_space<vmem>>, %arg4: memref<128x128xf32, #tpu.memory_space<vmem>>, %arg5: memref<16x128xf32, #tpu.memory_space<vmem>>) attributes {dimension_semantics = [#tpu.dimension_semantics<parallel>], iteration_bounds = array<i64: 1>, scalar_prefetch = 0 : i64, scratch_operands = 0 : i64, tpu.core_type = #tpu.core_type<tc>, window_params = [{transform_indices = @transform_0, window_bounds = array<i64: 16, 512>}, {pipeline_mode = #tpu.pipeline_mode<synchronous>, transform_indices = @transform_1, window_bounds = array<i64: 512, 128>}, {pipeline_mode = #tpu.pipeline_mode<synchronous>, transform_indices = @transform_2, window_bounds = array<i64: 128, 128>}, {pipeline_mode = #tpu.pipeline_mode<synchronous>, transform_indices = @transform_3, window_bounds = array<i64: 128, 128>}, {transform_indices = @transform_4, window_bounds = array<i64: 16, 128>}]} {
    %c0 = arith.constant 0 : index
    %c0_0 = arith.constant 0 : index
    %0 = vector.load %arg1[%c0, %c0_0] : memref<16x512xf32, #tpu.memory_space<vmem>>, vector<16x512xf32>
    %c0_1 = arith.constant 0 : index
    %c0_2 = arith.constant 0 : index
    %1 = vector.load %arg2[%c0_1, %c0_2] : memref<512x128xf32, #tpu.memory_space<vmem>>, vector<512x128xf32>
    %cst = arith.constant dense<0.000000e+00> : vector<16x128xf32>
    %2 = tpu.matmul %0, %1, %cst {dimension_numbers = #tpu.dot_dimension_numbers<[1], [0], [0], [1], [0, 0, 1, 1], [], []>} : vector<16x512xf32>, vector<512x128xf32>, vector<16x128xf32> -> vector<16x128xf32>
    %cst_3 = arith.constant 0.000000e+00 : f32
    %3 = vector.broadcast %cst_3 : f32 to vector<16x128xf32>
    %4 = arith.maximumf %2, %3 : vector<16x128xf32>
    %c0_4 = arith.constant 0 : index
    %c0_5 = arith.constant 0 : index
    %5 = vector.load %arg3[%c0_4, %c0_5] : memref<128x128xf32, #tpu.memory_space<vmem>>, vector<128x128xf32>
    %cst_6 = arith.constant dense<0.000000e+00> : vector<16x128xf32>
    %6 = tpu.matmul %4, %5, %cst_6 {dimension_numbers = #tpu.dot_dimension_numbers<[1], [0], [0], [1], [0, 0, 1, 1], [], []>} : vector<16x128xf32>, vector<128x128xf32>, vector<16x128xf32> -> vector<16x128xf32>
    %cst_7 = arith.constant 0.000000e+00 : f32
    %7 = vector.broadcast %cst_7 : f32 to vector<16x128xf32>
    %8 = arith.maximumf %6, %7 : vector<16x128xf32>
    %c0_8 = arith.constant 0 : index
    %c0_9 = arith.constant 0 : index
    %9 = vector.load %arg4[%c0_8, %c0_9] : memref<128x128xf32, #tpu.memory_space<vmem>>, vector<128x128xf32>
    %cst_10 = arith.constant dense<0.000000e+00> : vector<16x128xf32>
    %10 = tpu.matmul %8, %9, %cst_10 {dimension_numbers = #tpu.dot_dimension_numbers<[1], [0], [0], [1], [0, 0, 1, 1], [], []>} : vector<16x128xf32>, vector<128x128xf32>, vector<16x128xf32> -> vector<16x128xf32>
    %c0_11 = arith.constant 0 : index
    %c0_12 = arith.constant 0 : index
    %11 = vector.load %arg5[%c0_11, %c0_12] : memref<16x128xf32, #tpu.memory_space<vmem>>, vector<16x128xf32>
    tpu.vector_store %arg5[%c0_11, %c0_12], %10 {strides = array<i32>} : memref<16x128xf32, #tpu.memory_space<vmem>>, vector<16x128xf32>,
    return
  }
  func.func @transform_0(%arg0: i32) -> (i32, i32) {
    %c0_i32 = arith.constant 0 : i32
    %c0_i32_0 = arith.constant 0 : i32
    return %arg0, %c0_i32 : i32, i32
  }
  func.func @transform_1(%arg0: i32) -> (i32, i32) {
    %c0_i32 = arith.constant 0 : i32
    %c0_i32_0 = arith.constant 0 : i32
    %c0_i32_1 = arith.constant 0 : i32
    return %c0_i32, %c0_i32_0 : i32, i32
  }
  func.func @transform_2(%arg0: i32) -> (i32, i32) {
    %c0_i32 = arith.constant 0 : i32
    %c0_i32_0 = arith.constant 0 : i32
    %c0_i32_1 = arith.constant 0 : i32
    return %c0_i32, %c0_i32_0 : i32, i32
  }
  func.func @transform_3(%arg0: i32) -> (i32, i32) {
    %c0_i32 = arith.constant 0 : i32
    %c0_i32_0 = arith.constant 0 : i32
    %c0_i32_1 = arith.constant 0 : i32
    return %c0_i32, %c0_i32_0 : i32, i32
  }
  func.func @transform_4(%arg0: i32) -> (i32, i32) {
    %c0_i32 = arith.constant 0 : i32
    %c0_i32_0 = arith.constant 0 : i32
    return %arg0, %c0_i32 : i32, i32
  }
}

</mosaic_0001>

<llo_original>
// kernel: net_forward.3
$region0: #{net_forward.3}
  #allocation0 [shape = 'u32[]', space=smem, size = 0x4, offset = 0x4, fixed_abs, tag = 'smem constant byte address 0x4 - core index']
  #allocation1 [shape = 'u32[144,128]{1,0:T(1,128)}', space=vmem, size = 0x12000, scoped, tag = 'internal scratch']
  %s0 = inlined_call_operand.hbm [shape: f32[16,80], index: 0, kind: input, shape index: {}]
  %s1 = inlined_call_operand.hbm [shape: f32[4,80,512], index: 1, kind: input, shape index: {}]
  %s2 = inlined_call_operand.hbm [shape: f32[16,512], index: 2, kind: output, shape index: {}]
  %s3 = sld [smem:[#allocation0]]
  $region26: #{net_forward.3} parent=0
    _
  %s5 = ssub.s32 1, %s3
  %s6 = scalar_select 0, %s5, %s3
  $region1: #{net_forward.3} parent=0
    #allocation2 [shape = 'u8[8192]{0}', space=vmem, size = 0x2000, scoped, tag = 'input window, operand 0, single buffered']
    #allocation3 [shape = 's32[1]{0}', space=sflag, size = 0x4, scoped, tag = 'scoped memory for net_forward.3']
    #allocation4 [shape = 's32[1]{0}', space=sflag, size = 0x4, scoped, tag = 'scoped memory for net_forward.3']
    #allocation5 [shape = 'u8[655360]{0}', space=vmem, size = 0xa0000, scoped, tag = 'input window, operand 1, single buffered']
    #allocation6 [shape = 's32[1]{0}', space=sflag, size = 0x4, scoped, tag = 'scoped memory for net_forward.3']
    #allocation7 [shape = 'u8[32768]{0}', space=vmem, size = 0x8000, scoped, tag = 'output window, operand 0, single buffered']
    %7 = vsyncpa [#allocation3], 0
    %8 = vsyncpa [#allocation6], 0
    %9 = vsyncpa [#allocation4], 0
    // Predicated region
    $region2: #{net_forward.3} parent=1 // pred_check
      _
    $region3: #{net_forward.3} parent=1 // pred_check_branch
      %11 = sbr.rel (0) target = $region5
    $region4: #{net_forward.3} parent=1 // pred_region
      %s13 = ssub.s32 256, 256
      %14 = vsyncadd [#allocation3], %s13
      %s15 = sshll.u32 [#allocation2], 4
      %s16 = int_to_ptr.vmem [resolvable:$true] %s15
      %21 = dma.hbm_to_vmem [thread:$0]  %s0, 256, %s16, [#allocation3], 128, 128, 8
    $region5: #{net_forward.3} parent=1 // pred_fallthru
      _
    // Predicated region
    $region6: #{net_forward.3} parent=1 // pred_check
      _
    $region7: #{net_forward.3} parent=1 // pred_check_branch
      %23 = sbr.rel (0) target = $region9
    $region8: #{net_forward.3} parent=1 // pred_region
      %s25 = ssub.s32 20480, 20480
      %26 = vsyncadd [#allocation6], %s25
      %s27 = sshll.u32 [#allocation5], 4
      %s28 = int_to_ptr.vmem [resolvable:$true] %s27
      %33 = dma.hbm_to_vmem [thread:$0]  %s1, 20480, %s28, [#allocation6], 512, 512, 32
    $region9: #{net_forward.3} parent=1 // pred_fallthru
      _
    // Predicated region
    $region10: #{net_forward.3} parent=1 // pred_check
      _
    $region11: #{net_forward.3} parent=1 // pred_check_branch
      %35 = sbr.rel (0) target = $region13
    $region12: #{net_forward.3} parent=1 // pred_region
      %36 = dma.done [#allocation3], 256
    $region13: #{net_forward.3} parent=1 // pred_fallthru
      _
    // Predicated region
    $region14: #{net_forward.3} parent=1 // pred_check
      _
    $region15: #{net_forward.3} parent=1 // pred_check_branch
      %38 = sbr.rel (0) target = $region17
    $region16: #{net_forward.3} parent=1 // pred_region
      %39 = dma.done [#allocation6], 20480
    $region17: #{net_forward.3} parent=1 // pred_fallthru
      _
    %v40 = vld [vmem:[#allocation2] sm:$0xff]
    %v41 = vld [vmem:[#allocation2 + $0x8] sm:$0xff]
    %v42 = vld [vmem:[#allocation5] sm:$0xff]
    %v43 = vld [vmem:[#allocation5 + $0x8] sm:$0xff]
    %v44 = vld [vmem:[#allocation5 + $0x10] sm:$0xff]
    %v45 = vld [vmem:[#allocation5 + $0x18] sm:$0xff]
    %v46 = vld [vmem:[#allocation5 + $0x20] sm:$0xff]
    %v47 = vld [vmem:[#allocation5 + $0x28] sm:$0xff]
    %v48 = vld [vmem:[#allocation5 + $0x30] sm:$0xff]
    %v49 = vld [vmem:[#allocation5 + $0x38] sm:$0xff]
    %v50 = vld [vmem:[#allocation5 + $0x40] sm:$0xff]
    %v51 = vld [vmem:[#allocation5 + $0x48] sm:$0xff]
    %v52 = vld [vmem:[#allocation5 + $0x50] sm:$0xff]
    %v53 = vld [vmem:[#allocation5 + $0x58] sm:$0xff]
    %v54 = vld [vmem:[#allocation5 + $0x60] sm:$0xff]
    %v55 = vld [vmem:[#allocation5 + $0x68] sm:$0xff]
    %v56 = vld [vmem:[#allocation5 + $0x70] sm:$0xff]
    %v57 = vld [vmem:[#allocation5 + $0x78] sm:$0xff]
    %v58 = vld [vmem:[#allocation5 + $0x80] sm:$0xff]
    %v59 = vld [vmem:[#allocation5 + $0x88] sm:$0xff]
    %v60 = vld [vmem:[#allocation5 + $0x90] sm:$0xff]
    %v61 = vld [vmem:[#allocation5 + $0x98] sm:$0xff]
    %v62 = vld [vmem:[#allocation5 + $0xa0] sm:$0xff]
    %v63 = vld [vmem:[#allocation5 + $0xa8] sm:$0xff]
    %v64 = vld [vmem:[#allocation5 + $0xb0] sm:$0xff]
    %v65 = vld [vmem:[#allocation5 + $0xb8] sm:$0xff]
    %v66 = vld [vmem:[#allocation5 + $0xc0] sm:$0xff]
    %v67 = vld [vmem:[#allocation5 + $0xc8] sm:$0xff]
    %v68 = vld [vmem:[#allocation5 + $0xd0] sm:$0xff]
    %v69 = vld [vmem:[#allocation5 + $0xd8] sm:$0xff]
    %v70 = vld [vmem:[#allocation5 + $0xe0] sm:$0xff]
    %v71 = vld [vmem:[#allocation5 + $0xe8] sm:$0xff]
    %v72 = vld [vmem:[#allocation5 + $0xf0] sm:$0xff]
    %v73 = vld [vmem:[#allocation5 + $0xf8] sm:$0xff]
    %v74 = vld [vmem:[#allocation5 + $0x100] sm:$0xff]
    %v75 = vld [vmem:[#allocation5 + $0x108] sm:$0xff]
    %v76 = vld [vmem:[#allocation5 + $0x110] sm:$0xff]
    %v77 = vld [vmem:[#allocation5 + $0x118] sm:$0xff]
    %v78 = vld [vmem:[#allocation5 + $0x120] sm:$0xff]
    %v79 = vld [vmem:[#allocation5 + $0x128] sm:$0xff]
    %v80 = vld [vmem:[#allocation5 + $0x130] sm:$0xff]
    %v81 = vld [vmem:[#allocation5 + $0x138] sm:$0xff]
    %vm82 = vcmask 654336
    %v84 = vsel %vm82, %v40, 0
    %v87 = vsel %vm82, %v41, 0
    %89 = vmatprep.subr.mxu0 %v43
    %90 = vmatpush1.msra.mxu0 %v42
    %91 = vmatprep.subr.mxu0 %v47
    %92 = vmatpush1.msra.mxu0 %v46
    %93 = vmatprep.subr.mxu0 %v51
    %94 = vmatpush1.msra.mxu0 %v50
    %95 = vmatprep.subr.mxu0 %v55
    %96 = vmatpush1.msra.mxu0 %v54
    %97 = vmatprep.subr.mxu0 %v59
    %98 = vmatpush1.msra.mxu0 %v58
    %99 = vmatprep.subr.mxu0 %v63
    %100 = vmatpush1.msra.mxu0 %v62
    %101 = vmatprep.subr.mxu0 %v67
    %102 = vmatpush1.msra.mxu0 %v66
    %103 = vmatprep.subr.mxu0 %v71
    %104 = vmatpush1.msra.mxu0 %v70
    %105 = vmatprep.subr.mxu0 %v75
    %106 = vmatpush1.msra.mxu0 %v74
    %107 = vmatprep.subr.mxu0 %v79
    %108 = vmatpush1.msra.mxu0 %v78
    %109 = vmatprep.subr.mxu0 0.0
    %110 = vmatpush1.msra.mxu0 0.0
    %111 = vmatprep.subr.mxu0 0.0
    %112 = vmatpush1.msra.mxu0 0.0
    %113 = vmatprep.subr.mxu0 0.0
    %114 = vmatpush1.msra.mxu0 0.0
    %115 = vmatprep.subr.mxu0 0.0
    %116 = vmatpush1.msra.mxu0 0.0
    %117 = vmatprep.subr.mxu0 0.0
    %118 = vmatpush1.msra.mxu0 0.0
    %119 = vmatprep.subr.mxu0 0.0
    %120 = vmatpush1.msra.mxu0 0.0
    %121 = vmatprep.subr.mxu0 0.0
    %122 = vmatpush1.msra.mxu0 0.0
    %123 = vmatprep.subr.mxu0 0.0
    %124 = vmatpush1.msra.mxu0 0.0
    %125 = vmatprep.subr.mxu0 0.0
    %126 = vmatpush1.msra.mxu0 0.0
    %127 = vmatprep.subr.mxu0 0.0
    %128 = vmatpush1.msra.mxu0 0.0
    %129 = vmatprep.subr.mxu0 0.0
    %130 = vmatpush1.msra.mxu0 0.0
    %131 = vmatprep.subr.mxu0 0.0
    %132 = vmatpush1.msra.mxu0 0.0
    %133 = vmatprep.subr.mxu0 0.0
    %134 = vmatpush1.msra.mxu0 0.0
    %135 = vmatprep.subr.mxu0 0.0
    %136 = vmatpush1.msra.mxu0 0.0
    %137 = vmatprep.subr.mxu0 0.0
    %138 = vmatpush1.msra.mxu0 0.0
    %139 = vmatprep.subr.mxu0 0.0
    %140 = vmatpush1.msra.mxu0 0.0
    %141 = vmatprep.subr.mxu0 0.0
    %142 = vmatpush1.msra.mxu0 0.0
    %143 = vmatprep.subr.mxu0 0.0
    %144 = vmatpush1.msra.mxu0 0.0
    %145 = vmatprep.subr.mxu0 0.0
    %146 = vmatpush1.msra.mxu0 0.0
    %147 = vmatprep.subr.mxu0 0.0
    %148 = vmatpush1.msra.mxu0 0.0
    %149 = vmatprep.subr.mxu0 0.0
    %150 = vmatpush1.msra.mxu0 0.0
    %151 = vmatprep.subr.mxu0 0.0
    %152 = vmatpush1.msra.mxu0 0.0
    %153 = vmatprep.mubr.f32.mxu0 0.0
    %154 = vmatmul.mubr.f32.gmra.mrb[0].mxu0 %v84
    %v155 = vpop.f32.mrb[0].mxu0
    %v156 = vadd.f32 0.0, %v155
    %v157 = vpop.f32.mrb[0].mxu0
    %v158 = vadd.f32 0.0, %v157
    %159 = vmatprep.mubr.f32.mxu0 0.0
    %160 = vmatmul.mubr.f32.gmra.mrb[0].mxu0 %v87
    %v161 = vpop.f32.mrb[0].mxu0
    %v162 = vadd.f32 0.0, %v161
    %v163 = vpop.f32.mrb[0].mxu0
    %v164 = vadd.f32 0.0, %v163
    %165 = vdwg.mxu0
    %166 = vmatprep.subr.mxu0 %v45
    %167 = vmatpush1.msra.mxu0 %v44
    %168 = vmatprep.subr.mxu0 %v49
    %169 = vmatpush1.msra.mxu0 %v48
    %170 = vmatprep.subr.mxu0 %v53
    %171 = vmatpush1.msra.mxu0 %v52
    %172 = vmatprep.subr.mxu0 %v57
    %173 = vmatpush1.msra.mxu0 %v56
    %174 = vmatprep.subr.mxu0 %v61
    %175 = vmatpush1.msra.mxu0 %v60
    %176 = vmatprep.subr.mxu0 %v65
    %177 = vmatpush1.msra.mxu0 %v64
    %178 = vmatprep.subr.mxu0 %v69
    %179 = vmatpush1.msra.mxu0 %v68
    %180 = vmatprep.subr.mxu0 %v73
    %181 = vmatpush1.msra.mxu0 %v72
    %182 = vmatprep.subr.mxu0 %v77
    %183 = vmatpush1.msra.mxu0 %v76
    %184 = vmatprep.subr.mxu0 %v81
    %185 = vmatpush1.msra.mxu0 %v80
    %186 = vmatprep.subr.mxu0 0.0
    %187 = vmatpush1.msra.mxu0 0.0
    %188 = vmatprep.subr.mxu0 0.0
    %189 = vmatpush1.msra.mxu0 0.0
    %190 = vmatprep.subr.mxu0 0.0
    %191 = vmatpush1.msra.mxu0 0.0
    %192 = vmatprep.subr.mxu0 0.0
    %193 = vmatpush1.msra.mxu0 0.0
    %194 = vmatprep.subr.mxu0 0.0
    %195 = vmatpush1.msra.mxu0 0.0
    %196 = vmatprep.subr.mxu0 0.0
    %197 = vmatpush1.msra.mxu0 0.0
    %198 = vmatprep.subr.mxu0 0.0
    %199 = vmatpush1.msra.mxu0 0.0
    %200 = vmatprep.subr.mxu0 0.0
    %201 = vmatpush1.msra.mxu0 0.0
    %202 = vmatprep.subr.mxu0 0.0
    %203 = vmatpush1.msra.mxu0 0.0
    %204 = vmatprep.subr.mxu0 0.0
    %205 = vmatpush1.msra.mxu0 0.0
    %206 = vmatprep.subr.mxu0 0.0
    %207 = vmatpush1.msra.mxu0 0.0
    %208 = vmatprep.subr.mxu0 0.0
    %209 = vmatpush1.msra.mxu0 0.0
    %210 = vmatprep.subr.mxu0 0.0
    %211 = vmatpush1.msra.mxu0 0.0
    %212 = vmatprep.subr.mxu0 0.0
    %213 = vmatpush1.msra.mxu0 0.0
    %214 = vmatprep.subr.mxu0 0.0
    %215 = vmatpush1.msra.mxu0 0.0
    %216 = vmatprep.subr.mxu0 0.0
    %217 = vmatpush1.msra.mxu0 0.0
    %218 = vmatprep.subr.mxu0 0.0
    %219 = vmatpush1.msra.mxu0 0.0
    %220 = vmatprep.subr.mxu0 0.0
    %221 = vmatpush1.msra.mxu0 0.0
    %222 = vmatprep.subr.mxu0 0.0
    %223 = vmatpush1.msra.mxu0 0.0
    %224 = vmatprep.subr.mxu0 0.0
    %225 = vmatpush1.msra.mxu0 0.0
    %226 = vmatprep.subr.mxu0 0.0
    %227 = vmatpush1.msra.mxu0 0.0
    %228 = vmatprep.subr.mxu0 0.0
    %229 = vmatpush1.msra.mxu0 0.0
    %230 = vmatprep.mubr.f32.mxu0 0.0
    %231 = vmatmul.mubr.f32.gmra.mrb[0].mxu0 %v84
    %v232 = vpop.f32.mrb[0].mxu0
    %v233 = vadd.f32 0.0, %v232
    %v234 = vpop.f32.mrb[0].mxu0
    %v235 = vadd.f32 0.0, %v234
    %236 = vmatprep.mubr.f32.mxu0 0.0
    %237 = vmatmul.mubr.f32.gmra.mrb[0].mxu0 %v87
    %v238 = vpop.f32.mrb[0].mxu0
    %v239 = vadd.f32 0.0, %v238
    %v240 = vpop.f32.mrb[0].mxu0
    %v241 = vadd.f32 0.0, %v240
    %242 = vdwg.mxu0
    %s243 = scalar_lea.vmem [#allocation5], 320
    %v244 = vld [vmem:[%s243] sm:$0xff]
    %v245 = vld [vmem:[%s243 + $0x8] sm:$0xff]
    %v246 = vld [vmem:[%s243 + $0x10] sm:$0xff]
    %v247 = vld [vmem:[%s243 + $0x18] sm:$0xff]
    %v248 = vld [vmem:[%s243 + $0x20] sm:$0xff]
    %v249 = vld [vmem:[%s243 + $0x28] sm:$0xff]
    %v250 = vld [vmem:[%s243 + $0x30] sm:$0xff]
    %v251 = vld [vmem:[%s243 + $0x38] sm:$0xff]
    %v252 = vld [vmem:[%s243 + $0x40] sm:$0xff]
    %v253 = vld [vmem:[%s243 + $0x48] sm:$0xff]
    %v254 = vld [vmem:[%s243 + $0x50] sm:$0xff]
    %v255 = vld [vmem:[%s243 + $0x58] sm:$0xff]
    %v256 = vld [vmem:[%s243 + $0x60] sm:$0xff]
    %v257 = vld [vmem:[%s243 + $0x68] sm:$0xff]
    %v258 = vld [vmem:[%s243 + $0x70] sm:$0xff]
    %v259 = vld [vmem:[%s243 + $0x78] sm:$0xff]
    %v260 = vld [vmem:[%s243 + $0x80] sm:$0xff]
    %v261 = vld [vmem:[%s243 + $0x88] sm:$0xff]
    %v262 = vld [vmem:[%s243 + $0x90] sm:$0xff]
    %v263 = vld [vmem:[%s243 + $0x98] sm:$0xff]
    %v264 = vld [vmem:[%s243 + $0xa0] sm:$0xff]
    %v265 = vld [vmem:[%s243 + $0xa8] sm:$0xff]
    %v266 = vld [vmem:[%s243 + $0xb0] sm:$0xff]
    %v267 = vld [vmem:[%s243 + $0xb8] sm:$0xff]
    %v268 = vld [vmem:[%s243 + $0xc0] sm:$0xff]
    %v269 = vld [vmem:[%s243 + $0xc8] sm:$0xff]
    %v270 = vld [vmem:[%s243 + $0xd0] sm:$0xff]
    %v271 = vld [vmem:[%s243 + $0xd8] sm:$0xff]
    %v272 = vld [vmem:[%s243 + $0xe0] sm:$0xff]
    %v273 = vld [vmem:[%s243 + $0xe8] sm:$0xff]
    %v274 = vld [vmem:[%s243 + $0xf0] sm:$0xff]
    %v275 = vld [vmem:[%s243 + $0xf8] sm:$0xff]
    %v276 = vld [vmem:[%s243 + $0x100] sm:$0xff]
    %v277 = vld [vmem:[%s243 + $0x108] sm:$0xff]
    %v278 = vld [vmem:[%s243 + $0x110] sm:$0xff]
    %v279 = vld [vmem:[%s243 + $0x118] sm:$0xff]
    %v280 = vld [vmem:[%s243 + $0x120] sm:$0xff]
    %v281 = vld [vmem:[%s243 + $0x128] sm:$0xff]
    %v282 = vld [vmem:[%s243 + $0x130] sm:$0xff]
    %v283 = vld [vmem:[%s243 + $0x138] sm:$0xff]
    %284 = vmatprep.subr.mxu0 %v245
    %285 = vmatpush1.msra.mxu0 %v244
    %286 = vmatprep.subr.mxu0 %v249
    %287 = vmatpush1.msra.mxu0 %v248
    %288 = vmatprep.subr.mxu0 %v253
    %289 = vmatpush1.msra.mxu0 %v252
    %290 = vmatprep.subr.mxu0 %v257
    %291 = vmatpush1.msra.mxu0 %v256
    %292 = vmatprep.subr.mxu0 %v261
    %293 = vmatpush1.msra.mxu0 %v260
    %294 = vmatprep.subr.mxu0 %v265
    %295 = vmatpush1.msra.mxu0 %v264
    %296 = vmatprep.subr.mxu0 %v269
    %297 = vmatpush1.msra.mxu0 %v268
    %298 = vmatprep.subr.mxu0 %v273
    %299 = vmatpush1.msra.mxu0 %v272
    %300 = vmatprep.subr.mxu0 %v277
    %301 = vmatpush1.msra.mxu0 %v276
    %302 = vmatprep.subr.mxu0 %v281
    %303 = vmatpush1.msra.mxu0 %v280
    %304 = vmatprep.subr.mxu0 0.0
    %305 = vmatpush1.msra.mxu0 0.0
    %306 = vmatprep.subr.mxu0 0.0
    %307 = vmatpush1.msra.mxu0 0.0
    %308 = vmatprep.subr.mxu0 0.0
    %309 = vmatpush1.msra.mxu0 0.0
    %310 = vmatprep.subr.mxu0 0.0
    %311 = vmatpush1.msra.mxu0 0.0
    %312 = vmatprep.subr.mxu0 0.0
    %313 = vmatpush1.msra.mxu0 0.0
    %314 = vmatprep.subr.mxu0 0.0
    %315 = vmatpush1.msra.mxu0 0.0
    %316 = vmatprep.subr.mxu0 0.0
    %317 = vmatpush1.msra.mxu0 0.0
    %318 = vmatprep.subr.mxu0 0.0
    %319 = vmatpush1.msra.mxu0 0.0
    %320 = vmatprep.subr.mxu0 0.0
    %321 = vmatpush1.msra.mxu0 0.0
    %322 = vmatprep.subr.mxu0 0.0
    %323 = vmatpush1.msra.mxu0 0.0
    %324 = vmatprep.subr.mxu0 0.0
    %325 = vmatpush1.msra.mxu0 0.0
    %326 = vmatprep.subr.mxu0 0.0
    %327 = vmatpush1.msra.mxu0 0.0
    %328 = vmatprep.subr.mxu0 0.0
    %329 = vmatpush1.msra.mxu0 0.0
    %330 = vmatprep.subr.mxu0 0.0
    %331 = vmatpush1.msra.mxu0 0.0
    %332 = vmatprep.subr.mxu0 0.0
    %333 = vmatpush1.msra.mxu0 0.0
    %334 = vmatprep.subr.mxu0 0.0
    %335 = vmatpush1.msra.mxu0 0.0
    %336 = vmatprep.subr.mxu0 0.0
    %337 = vmatpush1.msra.mxu0 0.0
    %338 = vmatprep.subr.mxu0 0.0
    %339 = vmatpush1.msra.mxu0 0.0
    %340 = vmatprep.subr.mxu0 0.0
    %341 = vmatpush1.msra.mxu0 0.0
    %342 = vmatprep.subr.mxu0 0.0
    %343 = vmatpush1.msra.mxu0 0.0
    %344 = vmatprep.subr.mxu0 0.0
    %345 = vmatpush1.msra.mxu0 0.0
    %346 = vmatprep.subr.mxu0 0.0
    %347 = vmatpush1.msra.mxu0 0.0
    %348 = vmatprep.mubr.f32.mxu0 0.0
    %349 = vmatmul.mubr.f32.gmra.mrb[0].mxu0 %v84
    %v350 = vpop.f32.mrb[0].mxu0
    %v351 = vadd.f32 0.0, %v350
    %v352 = vpop.f32.mrb[0].mxu0
    %v353 = vadd.f32 0.0, %v352
    %354 = vmatprep.mubr.f32.mxu0 0.0
    %355 = vmatmul.mubr.f32.gmra.mrb[0].mxu0 %v87
    %v356 = vpop.f32.mrb[0].mxu0
    %v357 = vadd.f32 0.0, %v356
    %v358 = vpop.f32.mrb[0].mxu0
    %v359 = vadd.f32 0.0, %v358
    %360 = vdwg.mxu0
    %361 = vmatprep.subr.mxu0 %v247
    %362 = vmatpush1.msra.mxu0 %v246
    %363 = vmatprep.subr.mxu0 %v251
    %364 = vmatpush1.msra.mxu0 %v250
    %365 = vmatprep.subr.mxu0 %v255
    %366 = vmatpush1.msra.mxu0 %v254
    %367 = vmatprep.subr.mxu0 %v259
    %368 = vmatpush1.msra.mxu0 %v258
    %369 = vmatprep.subr.mxu0 %v263
    %370 = vmatpush1.msra.mxu0 %v262
    %371 = vmatprep.subr.mxu0 %v267
    %372 = vmatpush1.msra.mxu0 %v266
    %373 = vmatprep.subr.mxu0 %v271
    %374 = vmatpush1.msra.mxu0 %v270
    %375 = vmatprep.subr.mxu0 %v275
    %376 = vmatpush1.msra.mxu0 %v274
    %377 = vmatprep.subr.mxu0 %v279
    %378 = vmatpush1.msra.mxu0 %v278
    %379 = vmatprep.subr.mxu0 %v283
    %380 = vmatpush1.msra.mxu0 %v282
    %381 = vmatprep.subr.mxu0 0.0
    %382 = vmatpush1.msra.mxu0 0.0
    %383 = vmatprep.subr.mxu0 0.0
    %384 = vmatpush1.msra.mxu0 0.0
    %385 = vmatprep.subr.mxu0 0.0
    %386 = vmatpush1.msra.mxu0 0.0
    %387 = vmatprep.subr.mxu0 0.0
    %388 = vmatpush1.msra.mxu0 0.0
    %389 = vmatprep.subr.mxu0 0.0
    %390 = vmatpush1.msra.mxu0 0.0
    %391 = vmatprep.subr.mxu0 0.0
    %392 = vmatpush1.msra.mxu0 0.0
    %393 = vmatprep.subr.mxu0 0.0
    %394 = vmatpush1.msra.mxu0 0.0
    %395 = vmatprep.subr.mxu0 0.0
    %396 = vmatpush1.msra.mxu0 0.0
    %397 = vmatprep.subr.mxu0 0.0
    %398 = vmatpush1.msra.mxu0 0.0
    %399 = vmatprep.subr.mxu0 0.0
    %400 = vmatpush1.msra.mxu0 0.0
    %401 = vmatprep.subr.mxu0 0.0
    %402 = vmatpush1.msra.mxu0 0.0
    %403 = vmatprep.subr.mxu0 0.0
    %404 = vmatpush1.msra.mxu0 0.0
    %405 = vmatprep.subr.mxu0 0.0
    %406 = vmatpush1.msra.mxu0 0.0
    %407 = vmatprep.subr.mxu0 0.0
    %408 = vmatpush1.msra.mxu0 0.0
    %409 = vmatprep.subr.mxu0 0.0
    %410 = vmatpush1.msra.mxu0 0.0
    %411 = vmatprep.subr.mxu0 0.0
    %412 = vmatpush1.msra.mxu0 0.0
    %413 = vmatprep.subr.mxu0 0.0
    %414 = vmatpush1.msra.mxu0 0.0
    %415 = vmatprep.subr.mxu0 0.0
    %416 = vmatpush1.msra.mxu0 0.0
    %417 = vmatprep.subr.mxu0 0.0
    %418 = vmatpush1.msra.mxu0 0.0
    %419 = vmatprep.subr.mxu0 0.0
    %420 = vmatpush1.msra.mxu0 0.0
    %421 = vmatprep.subr.mxu0 0.0
    %422 = vmatpush1.msra.mxu0 0.0
    %423 = vmatprep.subr.mxu0 0.0
    %424 = vmatpush1.msra.mxu0 0.0
    %425 = vmatprep.mubr.f32.mxu0 0.0
    %426 = vmatmul.mubr.f32.gmra.mrb[0].mxu0 %v84
    %v427 = vpop.f32.mrb[0].mxu0
    %v428 = vadd.f32 0.0, %v427
    %v429 = vpop.f32.mrb[0].mxu0
    %v430 = vadd.f32 0.0, %v429
    %431 = vmatprep.mubr.f32.mxu0 0.0
    %432 = vmatmul.mubr.f32.gmra.mrb[0].mxu0 %v87
    %v433 = vpop.f32.mrb[0].mxu0
    %v434 = vadd.f32 0.0, %v433
    %v435 = vpop.f32.mrb[0].mxu0
    %v436 = vadd.f32 0.0, %v435
    %437 = vdwg.mxu0
    %s438 = scalar_lea.vmem [#allocation5], 640
    %v439 = vld [vmem:[%s438] sm:$0xff]
    %v440 = vld [vmem:[%s438 + $0x8] sm:$0xff]
    %v441 = vld [vmem:[%s438 + $0x10] sm:$0xff]
    %v442 = vld [vmem:[%s438 + $0x18] sm:$0xff]
    %v443 = vld [vmem:[%s438 + $0x20] sm:$0xff]
    %v444 = vld [vmem:[%s438 + $0x28] sm:$0xff]
    %v445 = vld [vmem:[%s438 + $0x30] sm:$0xff]
    %v446 = vld [vmem:[%s438 + $0x38] sm:$0xff]
    %v447 = vld [vmem:[%s438 + $0x40] sm:$0xff]
    %v448 = vld [vmem:[%s438 + $0x48] sm:$0xff]
    %v449 = vld [vmem:[%s438 + $0x50] sm:$0xff]
    %v450 = vld [vmem:[%s438 + $0x58] sm:$0xff]
    %v451 = vld [vmem:[%s438 + $0x60] sm:$0xff]
    %v452 = vld [vmem:[%s438 + $0x68] sm:$0xff]
    %v453 = vld [vmem:[%s438 + $0x70] sm:$0xff]
    %v454 = vld [vmem:[%s438 + $0x78] sm:$0xff]
    %v455 = vld [vmem:[%s438 + $0x80] sm:$0xff]
    %v456 = vld [vmem:[%s438 + $0x88] sm:$0xff]
    %v457 = vld [vmem:[%s438 + $0x90] sm:$0xff]
    %v458 = vld [vmem:[%s438 + $0x98] sm:$0xff]
    %v459 = vld [vmem:[%s438 + $0xa0] sm:$0xff]
    %v460 = vld [vmem:[%s438 + $0xa8] sm:$0xff]
    %v461 = vld [vmem:[%s438 + $0xb0] sm:$0xff]
    %v462 = vld [vmem:[%s438 + $0xb8] sm:$0xff]
    %v463 = vld [vmem:[%s438 + $0xc0] sm:$0xff]
    %v464 = vld [vmem:[%s438 + $0xc8] sm:$0xff]
    %v465 = vld [vmem:[%s438 + $0xd0] sm:$0xff]
    %v466 = vld [vmem:[%s438 + $0xd8] sm:$0xff]
    %v467 = vld [vmem:[%s438 + $0xe0] sm:$0xff]
    %v468 = vld [vmem:[%s438 + $0xe8] sm:$0xff]
    %v469 = vld [vmem:[%s438 + $0xf0] sm:$0xff]
    %v470 = vld [vmem:[%s438 + $0xf8] sm:$0xff]
    %v471 = vld [vmem:[%s438 + $0x100] sm:$0xff]
    %v472 = vld [vmem:[%s438 + $0x108] sm:$0xff]
    %v473 = vld [vmem:[%s438 + $0x110] sm:$0xff]
    %v474 = vld [vmem:[%s438 + $0x118] sm:$0xff]
    %v475 = vld [vmem:[%s438 + $0x120] sm:$0xff]
    %v476 = vld [vmem:[%s438 + $0x128] sm:$0xff]
    %v477 = vld [vmem:[%s438 + $0x130] sm:$0xff]
    %v478 = vld [vmem:[%s438 + $0x138] sm:$0xff]
    %479 = vmatprep.subr.mxu0 %v440
    %480 = vmatpush1.msra.mxu0 %v439
    %481 = vmatprep.subr.mxu0 %v444
    %482 = vmatpush1.msra.mxu0 %v443
    %483 = vmatprep.subr.mxu0 %v448
    %484 = vmatpush1.msra.mxu0 %v447
    %485 = vmatprep.subr.mxu0 %v452
    %486 = vmatpush1.msra.mxu0 %v451
    %487 = vmatprep.subr.mxu0 %v456
    %488 = vmatpush1.msra.mxu0 %v455
    %489 = vmatprep.subr.mxu0 %v460
    %490 = vmatpush1.msra.mxu0 %v459
    %491 = vmatprep.subr.mxu0 %v464
    %492 = vmatpush1.msra.mxu0 %v463
    %493 = vmatprep.subr.mxu0 %v468
    %494 = vmatpush1.msra.mxu0 %v467
    %495 = vmatprep.subr.mxu0 %v472
    %496 = vmatpush1.msra.mxu0 %v471
    %497 = vmatprep.subr.mxu0 %v476
    %498 = vmatpush1.msra.mxu0 %v475
    %499 = vmatprep.subr.mxu0 0.0
    %500 = vmatpush1.msra.mxu0 0.0
    %501 = vmatprep.subr.mxu0 0.0
    %502 = vmatpush1.msra.mxu0 0.0
    %503 = vmatprep.subr.mxu0 0.0
    %504 = vmatpush1.msra.mxu0 0.0
    %505 = vmatprep.subr.mxu0 0.0
    %506 = vmatpush1.msra.mxu0 0.0
    %507 = vmatprep.subr.mxu0 0.0
    %508 = vmatpush1.msra.mxu0 0.0
    %509 = vmatprep.subr.mxu0 0.0
    %510 = vmatpush1.msra.mxu0 0.0
    %511 = vmatprep.subr.mxu0 0.0
    %512 = vmatpush1.msra.mxu0 0.0
    %513 = vmatprep.subr.mxu0 0.0
    %514 = vmatpush1.msra.mxu0 0.0
    %515 = vmatprep.subr.mxu0 0.0
    %516 = vmatpush1.msra.mxu0 0.0
    %517 = vmatprep.subr.mxu0 0.0
    %518 = vmatpush1.msra.mxu0 0.0
    %519 = vmatprep.subr.mxu0 0.0
    %520 = vmatpush1.msra.mxu0 0.0
    %521 = vmatprep.subr.mxu0 0.0
    %522 = vmatpush1.msra.mxu0 0.0
    %523 = vmatprep.subr.mxu0 0.0
    %524 = vmatpush1.msra.mxu0 0.0
    %525 = vmatprep.subr.mxu0 0.0
    %526 = vmatpush1.msra.mxu0 0.0
    %527 = vmatprep.subr.mxu0 0.0
    %528 = vmatpush1.msra.mxu0 0.0
    %529 = vmatprep.subr.mxu0 0.0
    %530 = vmatpush1.msra.mxu0 0.0
    %531 = vmatprep.subr.mxu0 0.0
    %532 = vmatpush1.msra.mxu0 0.0
    %533 = vmatprep.subr.mxu0 0.0
    %534 = vmatpush1.msra.mxu0 0.0
    %535 = vmatprep.subr.mxu0 0.0
    %536 = vmatpush1.msra.mxu0 0.0
    %537 = vmatprep.subr.mxu0 0.0
    %538 = vmatpush1.msra.mxu0 0.0
    %539 = vmatprep.subr.mxu0 0.0
    %540 = vmatpush1.msra.mxu0 0.0
    %541 = vmatprep.subr.mxu0 0.0
    %542 = vmatpush1.msra.mxu0 0.0
    %543 = vmatprep.mubr.f32.mxu0 0.0
    %544 = vmatmul.mubr.f32.gmra.mrb[0].mxu0 %v84
    %v545 = vpop.f32.mrb[0].mxu0
    %v546 = vadd.f32 0.0, %v545
    %v547 = vpop.f32.mrb[0].mxu0
    %v548 = vadd.f32 0.0, %v547
    %549 = vmatprep.mubr.f32.mxu0 0.0
    %550 = vmatmul.mubr.f32.gmra.mrb[0].mxu0 %v87
    %v551 = vpop.f32.mrb[0].mxu0
    %v552 = vadd.f32 0.0, %v551
    %v553 = vpop.f32.mrb[0].mxu0
    %v554 = vadd.f32 0.0, %v553
    %555 = vdwg.mxu0
    %556 = vmatprep.subr.mxu0 %v442
    %557 = vmatpush1.msra.mxu0 %v441
    %558 = vmatprep.subr.mxu0 %v446
    %559 = vmatpush1.msra.mxu0 %v445
    %560 = vmatprep.subr.mxu0 %v450
    %561 = vmatpush1.msra.mxu0 %v449
    %562 = vmatprep.subr.mxu0 %v454
    %563 = vmatpush1.msra.mxu0 %v453
    %564 = vmatprep.subr.mxu0 %v458
    %565 = vmatpush1.msra.mxu0 %v457
    %566 = vmatprep.subr.mxu0 %v462
    %567 = vmatpush1.msra.mxu0 %v461
    %568 = vmatprep.subr.mxu0 %v466
    %569 = vmatpush1.msra.mxu0 %v465
    %570 = vmatprep.subr.mxu0 %v470
    %571 = vmatpush1.msra.mxu0 %v469
    %572 = vmatprep.subr.mxu0 %v474
    %573 = vmatpush1.msra.mxu0 %v473
    %574 = vmatprep.subr.mxu0 %v478
    %575 = vmatpush1.msra.mxu0 %v477
    %576 = vmatprep.subr.mxu0 0.0
    %577 = vmatpush1.msra.mxu0 0.0
    %578 = vmatprep.subr.mxu0 0.0
    %579 = vmatpush1.msra.mxu0 0.0
    %580 = vmatprep.subr.mxu0 0.0
    %581 = vmatpush1.msra.mxu0 0.0
    %582 = vmatprep.subr.mxu0 0.0
    %583 = vmatpush1.msra.mxu0 0.0
    %584 = vmatprep.subr.mxu0 0.0
    %585 = vmatpush1.msra.mxu0 0.0
    %586 = vmatprep.subr.mxu0 0.0
    %587 = vmatpush1.msra.mxu0 0.0
    %588 = vmatprep.subr.mxu0 0.0
    %589 = vmatpush1.msra.mxu0 0.0
    %590 = vmatprep.subr.mxu0 0.0
    %591 = vmatpush1.msra.mxu0 0.0
    %592 = vmatprep.subr.mxu0 0.0
    %593 = vmatpush1.msra.mxu0 0.0
    %594 = vmatprep.subr.mxu0 0.0
    %595 = vmatpush1.msra.mxu0 0.0
    %596 = vmatprep.subr.mxu0 0.0
    %597 = vmatpush1.msra.mxu0 0.0
    %598 = vmatprep.subr.mxu0 0.0
    %599 = vmatpush1.msra.mxu0 0.0
    %600 = vmatprep.subr.mxu0 0.0
    %601 = vmatpush1.msra.mxu0 0.0
    %602 = vmatprep.subr.mxu0 0.0
    %603 = vmatpush1.msra.mxu0 0.0
    %604 = vmatprep.subr.mxu0 0.0
    %605 = vmatpush1.msra.mxu0 0.0
    %606 = vmatprep.subr.mxu0 0.0
    %607 = vmatpush1.msra.mxu0 0.0
    %608 = vmatprep.subr.mxu0 0.0
    %609 = vmatpush1.msra.mxu0 0.0
    %610 = vmatprep.subr.mxu0 0.0
    %611 = vmatpush1.msra.mxu0 0.0
    %612 = vmatprep.subr.mxu0 0.0
    %613 = vmatpush1.msra.mxu0 0.0
    %614 = vmatprep.subr.mxu0 0.0
    %615 = vmatpush1.msra.mxu0 0.0
    %616 = vmatprep.subr.mxu0 0.0
    %617 = vmatpush1.msra.mxu0 0.0
    %618 = vmatprep.subr.mxu0 0.0
    %619 = vmatpush1.msra.mxu0 0.0
    %620 = vmatprep.mubr.f32.mxu0 0.0
    %621 = vmatmul.mubr.f32.gmra.mrb[0].mxu0 %v84
    %v622 = vpop.f32.mrb[0].mxu0
    %v623 = vadd.f32 0.0, %v622
    %v624 = vpop.f32.mrb[0].mxu0
    %v625 = vadd.f32 0.0, %v624
    %626 = vmatprep.mubr.f32.mxu0 0.0
    %627 = vmatmul.mubr.f32.gmra.mrb[0].mxu0 %v87
    %v628 = vpop.f32.mrb[0].mxu0
    %v629 = vadd.f32 0.0, %v628
    %v630 = vpop.f32.mrb[0].mxu0
    %v631 = vadd.f32 0.0, %v630
    %632 = vdwg.mxu0
    %s633 = scalar_lea.vmem [#allocation5], 960
    %v634 = vld [vmem:[%s633] sm:$0xff]
    %v635 = vld [vmem:[%s633 + $0x8] sm:$0xff]
    %v636 = vld [vmem:[%s633 + $0x10] sm:$0xff]
    %v637 = vld [vmem:[%s633 + $0x18] sm:$0xff]
    %v638 = vld [vmem:[%s633 + $0x20] sm:$0xff]
    %v639 = vld [vmem:[%s633 + $0x28] sm:$0xff]
    %v640 = vld [vmem:[%s633 + $0x30] sm:$0xff]
    %v641 = vld [vmem:[%s633 + $0x38] sm:$0xff]
    %v642 = vld [vmem:[%s633 + $0x40] sm:$0xff]
    %v643 = vld [vmem:[%s633 + $0x48] sm:$0xff]
    %v644 = vld [vmem:[%s633 + $0x50] sm:$0xff]
    %v645 = vld [vmem:[%s633 + $0x58] sm:$0xff]
    %v646 = vld [vmem:[%s633 + $0x60] sm:$0xff]
    %v647 = vld [vmem:[%s633 + $0x68] sm:$0xff]
    %v648 = vld [vmem:[%s633 + $0x70] sm:$0xff]
    %v649 = vld [vmem:[%s633 + $0x78] sm:$0xff]
    %v650 = vld [vmem:[%s633 + $0x80] sm:$0xff]
    %v651 = vld [vmem:[%s633 + $0x88] sm:$0xff]
    %v652 = vld [vmem:[%s633 + $0x90] sm:$0xff]
    %v653 = vld [vmem:[%s633 + $0x98] sm:$0xff]
    %v654 = vld [vmem:[%s633 + $0xa0] sm:$0xff]
    %v655 = vld [vmem:[%s633 + $0xa8] sm:$0xff]
    %v656 = vld [vmem:[%s633 + $0xb0] sm:$0xff]
    %v657 = vld [vmem:[%s633 + $0xb8] sm:$0xff]
    %v658 = vld [vmem:[%s633 + $0xc0] sm:$0xff]
    %v659 = vld [vmem:[%s633 + $0xc8] sm:$0xff]
    %v660 = vld [vmem:[%s633 + $0xd0] sm:$0xff]
    %v661 = vld [vmem:[%s633 + $0xd8] sm:$0xff]
    %v662 = vld [vmem:[%s633 + $0xe0] sm:$0xff]
    %v663 = vld [vmem:[%s633 + $0xe8] sm:$0xff]
    %v664 = vld [vmem:[%s633 + $0xf0] sm:$0xff]
    %v665 = vld [vmem:[%s633 + $0xf8] sm:$0xff]
    %v666 = vld [vmem:[%s633 + $0x100] sm:$0xff]
    %v667 = vld [vmem:[%s633 + $0x108] sm:$0xff]
    %v668 = vld [vmem:[%s633 + $0x110] sm:$0xff]
    %v669 = vld [vmem:[%s633 + $0x118] sm:$0xff]
    %v670 = vld [vmem:[%s633 + $0x120] sm:$0xff]
    %v671 = vld [vmem:[%s633 + $0x128] sm:$0xff]
    %v672 = vld [vmem:[%s633 + $0x130] sm:$0xff]
    %v673 = vld [vmem:[%s633 + $0x138] sm:$0xff]
    %674 = vmatprep.subr.mxu0 %v635
    %675 = vmatpush1.msra.mxu0 %v634
    %676 = vmatprep.subr.mxu0 %v639
    %677 = vmatpush1.msra.mxu0 %v638
    %678 = vmatprep.subr.mxu0 %v643
    %679 = vmatpush1.msra.mxu0 %v642
    %680 = vmatprep.subr.mxu0 %v647
    %681 = vmatpush1.msra.mxu0 %v646
    %682 = vmatprep.subr.mxu0 %v651
    %683 = vmatpush1.msra.mxu0 %v650
    %684 = vmatprep.subr.mxu0 %v655
    %685 = vmatpush1.msra.mxu0 %v654
    %686 = vmatprep.subr.mxu0 %v659
    %687 = vmatpush1.msra.mxu0 %v658
    %688 = vmatprep.subr.mxu0 %v663
    %689 = vmatpush1.msra.mxu0 %v662
    %690 = vmatprep.subr.mxu0 %v667
    %691 = vmatpush1.msra.mxu0 %v666
    %692 = vmatprep.subr.mxu0 %v671
    %693 = vmatpush1.msra.mxu0 %v670
    %694 = vmatprep.subr.mxu0 0.0
    %695 = vmatpush1.msra.mxu0 0.0
    %696 = vmatprep.subr.mxu0 0.0
    %697 = vmatpush1.msra.mxu0 0.0
    %698 = vmatprep.subr.mxu0 0.0
    %699 = vmatpush1.msra.mxu0 0.0
    %700 = vmatprep.subr.mxu0 0.0
    %701 = vmatpush1.msra.mxu0 0.0
    %702 = vmatprep.subr.mxu0 0.0
    %703 = vmatpush1.msra.mxu0 0.0
    %704 = vmatprep.subr.mxu0 0.0
    %705 = vmatpush1.msra.mxu0 0.0
    %706 = vmatprep.subr.mxu0 0.0
    %707 = vmatpush1.msra.mxu0 0.0
    %708 = vmatprep.subr.mxu0 0.0
    %709 = vmatpush1.msra.mxu0 0.0
    %710 = vmatprep.subr.mxu0 0.0
    %711 = vmatpush1.msra.mxu0 0.0
    %712 = vmatprep.subr.mxu0 0.0
    %713 = vmatpush1.msra.mxu0 0.0
    %714 = vmatprep.subr.mxu0 0.0
    %715 = vmatpush1.msra.mxu0 0.0
    %716 = vmatprep.subr.mxu0 0.0
    %717 = vmatpush1.msra.mxu0 0.0
    %718 = vmatprep.subr.mxu0 0.0
    %719 = vmatpush1.msra.mxu0 0.0
    %720 = vmatprep.subr.mxu0 0.0
    %721 = vmatpush1.msra.mxu0 0.0
    %722 = vmatprep.subr.mxu0 0.0
    %723 = vmatpush1.msra.mxu0 0.0
    %724 = vmatprep.subr.mxu0 0.0
    %725 = vmatpush1.msra.mxu0 0.0
    %726 = vmatprep.subr.mxu0 0.0
    %727 = vmatpush1.msra.mxu0 0.0
    %728 = vmatprep.subr.mxu0 0.0
    %729 = vmatpush1.msra.mxu0 0.0
    %730 = vmatprep.subr.mxu0 0.0
    %731 = vmatpush1.msra.mxu0 0.0
    %732 = vmatprep.subr.mxu0 0.0
    %733 = vmatpush1.msra.mxu0 0.0
    %734 = vmatprep.subr.mxu0 0.0
    %735 = vmatpush1.msra.mxu0 0.0
    %736 = vmatprep.subr.mxu0 0.0
    %737 = vmatpush1.msra.mxu0 0.0
    %738 = vmatprep.mubr.f32.mxu0 0.0
    %739 = vmatmul.mubr.f32.gmra.mrb[0].mxu0 %v84
    %v740 = vpop.f32.mrb[0].mxu0
    %v741 = vadd.f32 0.0, %v740
    %v742 = vpop.f32.mrb[0].mxu0
    %v743 = vadd.f32 0.0, %v742
    %744 = vmatprep.mubr.f32.mxu0 0.0
    %745 = vmatmul.mubr.f32.gmra.mrb[0].mxu0 %v87
    %v746 = vpop.f32.mrb[0].mxu0
    %v747 = vadd.f32 0.0, %v746
    %v748 = vpop.f32.mrb[0].mxu0
    %v749 = vadd.f32 0.0, %v748
    %750 = vdwg.mxu0
    %751 = vmatprep.subr.mxu0 %v637
    %752 = vmatpush1.msra.mxu0 %v636
    %753 = vmatprep.subr.mxu0 %v641
    %754 = vmatpush1.msra.mxu0 %v640
    %755 = vmatprep.subr.mxu0 %v645
    %756 = vmatpush1.msra.mxu0 %v644
    %757 = vmatprep.subr.mxu0 %v649
    %758 = vmatpush1.msra.mxu0 %v648
    %759 = vmatprep.subr.mxu0 %v653
    %760 = vmatpush1.msra.mxu0 %v652
    %761 = vmatprep.subr.mxu0 %v657
    %762 = vmatpush1.msra.mxu0 %v656
    %763 = vmatprep.subr.mxu0 %v661
    %764 = vmatpush1.msra.mxu0 %v660
    %765 = vmatprep.subr.mxu0 %v665
    %766 = vmatpush1.msra.mxu0 %v664
    %767 = vmatprep.subr.mxu0 %v669
    %768 = vmatpush1.msra.mxu0 %v668
    %769 = vmatprep.subr.mxu0 %v673
    %770 = vmatpush1.msra.mxu0 %v672
    %771 = vmatprep.subr.mxu0 0.0
    %772 = vmatpush1.msra.mxu0 0.0
    %773 = vmatprep.subr.mxu0 0.0
    %774 = vmatpush1.msra.mxu0 0.0
    %775 = vmatprep.subr.mxu0 0.0
    %776 = vmatpush1.msra.mxu0 0.0
    %777 = vmatprep.subr.mxu0 0.0
    %778 = vmatpush1.msra.mxu0 0.0
    %779 = vmatprep.subr.mxu0 0.0
    %780 = vmatpush1.msra.mxu0 0.0
    %781 = vmatprep.subr.mxu0 0.0
    %782 = vmatpush1.msra.mxu0 0.0
    %783 = vmatprep.subr.mxu0 0.0
    %784 = vmatpush1.msra.mxu0 0.0
    %785 = vmatprep.subr.mxu0 0.0
    %786 = vmatpush1.msra.mxu0 0.0
    %787 = vmatprep.subr.mxu0 0.0
    %788 = vmatpush1.msra.mxu0 0.0
    %789 = vmatprep.subr.mxu0 0.0
    %790 = vmatpush1.msra.mxu0 0.0
    %791 = vmatprep.subr.mxu0 0.0
    %792 = vmatpush1.msra.mxu0 0.0
    %793 = vmatprep.subr.mxu0 0.0
    %794 = vmatpush1.msra.mxu0 0.0
    %795 = vmatprep.subr.mxu0 0.0
    %796 = vmatpush1.msra.mxu0 0.0
    %797 = vmatprep.subr.mxu0 0.0
    %798 = vmatpush1.msra.mxu0 0.0
    %799 = vmatprep.subr.mxu0 0.0
    %800 = vmatpush1.msra.mxu0 0.0
    %801 = vmatprep.subr.mxu0 0.0
    %802 = vmatpush1.msra.mxu0 0.0
    %803 = vmatprep.subr.mxu0 0.0
    %804 = vmatpush1.msra.mxu0 0.0
    %805 = vmatprep.subr.mxu0 0.0
    %806 = vmatpush1.msra.mxu0 0.0
    %807 = vmatprep.subr.mxu0 0.0
    %808 = vmatpush1.msra.mxu0 0.0
    %809 = vmatprep.subr.mxu0 0.0
    %810 = vmatpush1.msra.mxu0 0.0
    %811 = vmatprep.subr.mxu0 0.0
    %812 = vmatpush1.msra.mxu0 0.0
    %813 = vmatprep.subr.mxu0 0.0
    %814 = vmatpush1.msra.mxu0 0.0
    %815 = vmatprep.mubr.f32.mxu0 0.0
    %816 = vmatmul.mubr.f32.gmra.mrb[0].mxu0 %v84
    %v817 = vpop.f32.mrb[0].mxu0
    %v818 = vadd.f32 0.0, %v817
    %v819 = vpop.f32.mrb[0].mxu0
    %v820 = vadd.f32 0.0, %v819
    %821 = vmatprep.mubr.f32.mxu0 0.0
    %822 = vmatmul.mubr.f32.gmra.mrb[0].mxu0 %v87
    %v823 = vpop.f32.mrb[0].mxu0
    %v824 = vadd.f32 0.0, %v823
    %v825 = vpop.f32.mrb[0].mxu0
    %v826 = vadd.f32 0.0, %v825
    %827 = vdwg.mxu0
    %v828 = vmax.f32 %v156, %v351
    %v829 = vmax.f32 %v158, %v353
    %v830 = vmax.f32 %v233, %v428
    %v831 = vmax.f32 %v235, %v430
    %v832 = vmax.f32 %v162, %v357
    %v833 = vmax.f32 %v164, %v359
    %v834 = vmax.f32 %v239, %v434
    %v835 = vmax.f32 %v241, %v436
    %v836 = vmax.f32 %v546, %v741
    %v837 = vmax.f32 %v548, %v743
    %v838 = vmax.f32 %v623, %v818
    %v839 = vmax.f32 %v625, %v820
    %v840 = vmax.f32 %v552, %v747
    %v841 = vmax.f32 %v554, %v749
    %v842 = vmax.f32 %v629, %v824
    %v843 = vmax.f32 %v631, %v826
    %v844 = vmax.f32 %v828, %v836
    %v845 = vmax.f32 %v829, %v837
    %v846 = vmax.f32 %v830, %v838
    %v847 = vmax.f32 %v831, %v839
    %v848 = vmax.f32 %v832, %v840
    %v849 = vmax.f32 %v833, %v841
    %v850 = vmax.f32 %v834, %v842
    %v851 = vmax.f32 %v835, %v843
    %v852 = vmax.f32 %v844, 0.0
    %v853 = vmax.f32 %v845, 0.0
    %v854 = vmax.f32 %v846, 0.0
    %v855 = vmax.f32 %v847, 0.0
    %v856 = vmax.f32 %v848, 0.0
    %v857 = vmax.f32 %v849, 0.0
    %v858 = vmax.f32 %v850, 0.0
    %v859 = vmax.f32 %v851, 0.0
    %860 = vst [vmem:[#allocation7] sm:$0xff] %v852
    %861 = vst [vmem:[#allocation7 + $0x8] sm:$0xff] %v853
    %862 = vst [vmem:[#allocation7 + $0x10] sm:$0xff] %v854
    %863 = vst [vmem:[#allocation7 + $0x18] sm:$0xff] %v855
    %864 = vst [vmem:[#allocation7 + $0x20] sm:$0xff] %v856
    %865 = vst [vmem:[#allocation7 + $0x28] sm:$0xff] %v857
    %866 = vst [vmem:[#allocation7 + $0x30] sm:$0xff] %v858
    %867 = vst [vmem:[#allocation7 + $0x38] sm:$0xff] %v859
    // Predicated region
    $region18: #{net_forward.3} parent=1 // pred_check
      _
    $region19: #{net_forward.3} parent=1 // pred_check_branch
      %869 = sbr.rel (0) target = $region21
    $region20: #{net_forward.3} parent=1 // pred_region
      %s871 = ssub.s32 1024, 1024
      %872 = vsyncadd [#allocation4], %s871
      %s873 = sshll.u32 [#allocation7], 4
      %s874 = int_to_ptr.vmem [resolvable:$true] %s873
      %879 = dma.vmem_to_hbm [thread:$0]  %s874, 1024, %s2, [#allocation4], 512, 512, 32
    $region21: #{net_forward.3} parent=1 // pred_fallthru
      _
    // Predicated region
    $region22: #{net_forward.3} parent=1 // pred_check
      _
    $region23: #{net_forward.3} parent=1 // pred_check_branch
      %881 = sbr.rel (0) target = $region25
    $region24: #{net_forward.3} parent=1 // pred_region
      %882 = dma.done [#allocation4], 1024
    $region25: #{net_forward.3} parent=1 // pred_fallthru
      _
    %883 = vsyncpa [#allocation3], 1
    %884 = vsyncpa [#allocation6], 1
    %885 = vsyncpa [#allocation4], 1

// kernel: net_forward.4
$region0: #{net_forward.4}
  #allocation0 [shape = 'u32[]', space=smem, size = 0x4, offset = 0x4, fixed_abs, tag = 'smem constant byte address 0x4 - core index']
  #allocation1 [shape = 'u32[144,128]{1,0:T(1,128)}', space=vmem, size = 0x12000, scoped, tag = 'internal scratch']
  %s0 = inlined_call_operand.hbm [shape: f32[16,160], index: 0, kind: input, shape index: {}]
  %s1 = inlined_call_operand.hbm [shape: f32[4,160,128], index: 1, kind: input, shape index: {}]
  %s2 = inlined_call_operand.hbm [shape: f32[16,128], index: 2, kind: output, shape index: {}]
  %s3 = sld [smem:[#allocation0]]
  $region26: #{net_forward.4} parent=0
    _
  %s5 = ssub.s32 1, %s3
  %s6 = scalar_select 0, %s5, %s3
  $region1: #{net_forward.4} parent=0
    #allocation2 [shape = 'u8[16384]{0}', space=vmem, size = 0x4000, scoped, tag = 'input window, operand 0, single buffered']
    #allocation3 [shape = 's32[1]{0}', space=sflag, size = 0x4, scoped, tag = 'scoped memory for net_forward.4']
    #allocation4 [shape = 's32[1]{0}', space=sflag, size = 0x4, scoped, tag = 'scoped memory for net_forward.4']
    #allocation5 [shape = 'u8[327680]{0}', space=vmem, size = 0x50000, scoped, tag = 'input window, operand 1, single buffered']
    #allocation6 [shape = 's32[1]{0}', space=sflag, size = 0x4, scoped, tag = 'scoped memory for net_forward.4']
    #allocation7 [shape = 'u8[8192]{0}', space=vmem, size = 0x2000, scoped, tag = 'output window, operand 0, single buffered']
    %7 = vsyncpa [#allocation3], 0
    %8 = vsyncpa [#allocation6], 0
    %9 = vsyncpa [#allocation4], 0
    // Predicated region
    $region2: #{net_forward.4} parent=1 // pred_check
      _
    $region3: #{net_forward.4} parent=1 // pred_check_branch
      %11 = sbr.rel (0) target = $region5
    $region4: #{net_forward.4} parent=1 // pred_region
      %s13 = ssub.s32 512, 512
      %14 = vsyncadd [#allocation3], %s13
      %s15 = sshll.u32 [#allocation2], 4
      %s16 = int_to_ptr.vmem [resolvable:$true] %s15
      %21 = dma.hbm_to_vmem [thread:$0]  %s0, 512, %s16, [#allocation3], 256, 256, 16
    $region5: #{net_forward.4} parent=1 // pred_fallthru
      _
    // Predicated region
    $region6: #{net_forward.4} parent=1 // pred_check
      _
    $region7: #{net_forward.4} parent=1 // pred_check_branch
      %23 = sbr.rel (0) target = $region9
    $region8: #{net_forward.4} parent=1 // pred_region
      %s25 = ssub.s32 10240, 10240
      %26 = vsyncadd [#allocation6], %s25
      %s27 = sshll.u32 [#allocation5], 4
      %s28 = int_to_ptr.vmem [resolvable:$true] %s27
      %33 = dma.hbm_to_vmem [thread:$0]  %s1, 10240, %s28, [#allocation6], 128, 128, 8
    $region9: #{net_forward.4} parent=1 // pred_fallthru
      _
    // Predicated region
    $region10: #{net_forward.4} parent=1 // pred_check
      _
    $region11: #{net_forward.4} parent=1 // pred_check_branch
      %35 = sbr.rel (0) target = $region13
    $region12: #{net_forward.4} parent=1 // pred_region
      %36 = dma.done [#allocation3], 512
    $region13: #{net_forward.4} parent=1 // pred_fallthru
      _
    // Predicated region
    $region14: #{net_forward.4} parent=1 // pred_check
      _
    $region15: #{net_forward.4} parent=1 // pred_check_branch
      %38 = sbr.rel (0) target = $region17
    $region16: #{net_forward.4} parent=1 // pred_region
      %39 = dma.done [#allocation6], 10240
    $region17: #{net_forward.4} parent=1 // pred_fallthru
      _
    %v40 = vld [vmem:[#allocation2] sm:$0xff]
    %v41 = vld [vmem:[#allocation2 + $0x8] sm:$0xff]
    %v42 = vld [vmem:[#allocation2 + $0x10] sm:$0xff]
    %v43 = vld [vmem:[#allocation2 + $0x18] sm:$0xff]
    %v44 = vld [vmem:[#allocation5] sm:$0xff]
    %v45 = vld [vmem:[#allocation5 + $0x8] sm:$0xff]
    %v46 = vld [vmem:[#allocation5 + $0x10] sm:$0xff]
    %v47 = vld [vmem:[#allocation5 + $0x18] sm:$0xff]
    %v48 = vld [vmem:[#allocation5 + $0x20] sm:$0xff]
    %v49 = vld [vmem:[#allocation5 + $0x28] sm:$0xff]
    %v50 = vld [vmem:[#allocation5 + $0x30] sm:$0xff]
    %v51 = vld [vmem:[#allocation5 + $0x38] sm:$0xff]
    %v52 = vld [vmem:[#allocation5 + $0x40] sm:$0xff]
    %v53 = vld [vmem:[#allocation5 + $0x48] sm:$0xff]
    %v54 = vld [vmem:[#allocation5 + $0x50] sm:$0xff]
    %v55 = vld [vmem:[#allocation5 + $0x58] sm:$0xff]
    %v56 = vld [vmem:[#allocation5 + $0x60] sm:$0xff]
    %v57 = vld [vmem:[#allocation5 + $0x68] sm:$0xff]
    %v58 = vld [vmem:[#allocation5 + $0x70] sm:$0xff]
    %v59 = vld [vmem:[#allocation5 + $0x78] sm:$0xff]
    %v60 = vld [vmem:[#allocation5 + $0x80] sm:$0xff]
    %v61 = vld [vmem:[#allocation5 + $0x88] sm:$0xff]
    %v62 = vld [vmem:[#allocation5 + $0x90] sm:$0xff]
    %v63 = vld [vmem:[#allocation5 + $0x98] sm:$0xff]
    %vm64 = vcmask 261120
    %v66 = vsel %vm64, %v41, 0
    %v69 = vsel %vm64, %v43, 0
    %71 = vmatprep.subr.mxu0 0.0
    %72 = vmatpush1.msra.mxu0 %v44
    %73 = vmatprep.subr.mxu0 0.0
    %74 = vmatpush1.msra.mxu0 %v45
    %75 = vmatprep.subr.mxu0 0.0
    %76 = vmatpush1.msra.mxu0 %v46
    %77 = vmatprep.subr.mxu0 0.0
    %78 = vmatpush1.msra.mxu0 %v47
    %79 = vmatprep.subr.mxu0 0.0
    %80 = vmatpush1.msra.mxu0 %v48
    %81 = vmatprep.subr.mxu0 0.0
    %82 = vmatpush1.msra.mxu0 %v49
    %83 = vmatprep.subr.mxu0 0.0
    %84 = vmatpush1.msra.mxu0 %v50
    %85 = vmatprep.subr.mxu0 0.0
    %86 = vmatpush1.msra.mxu0 %v51
    %87 = vmatprep.subr.mxu0 0.0
    %88 = vmatpush1.msra.mxu0 %v52
    %89 = vmatprep.subr.mxu0 0.0
    %90 = vmatpush1.msra.mxu0 %v53
    %91 = vmatprep.subr.mxu0 0.0
    %92 = vmatpush1.msra.mxu0 %v54
    %93 = vmatprep.subr.mxu0 0.0
    %94 = vmatpush1.msra.mxu0 %v55
    %95 = vmatprep.subr.mxu0 0.0
    %96 = vmatpush1.msra.mxu0 %v56
    %97 = vmatprep.subr.mxu0 0.0
    %98 = vmatpush1.msra.mxu0 %v57
    %99 = vmatprep.subr.mxu0 0.0
    %100 = vmatpush1.msra.mxu0 %v58
    %101 = vmatprep.subr.mxu0 0.0
    %102 = vmatpush1.msra.mxu0 %v59
    %103 = vmatprep.subr.mxu0 0.0
    %104 = vmatpush1.msra.mxu0 %v60
    %105 = vmatprep.subr.mxu0 0.0
    %106 = vmatpush1.msra.mxu0 %v61
    %107 = vmatprep.subr.mxu0 0.0
    %108 = vmatpush1.msra.mxu0 %v62
    %109 = vmatprep.subr.mxu0 0.0
    %110 = vmatpush1.msra.mxu0 %v63
    %111 = vmatprep.subr.mxu0 0.0
    %112 = vmatpush1.msra.mxu0 0.0
    %113 = vmatprep.subr.mxu0 0.0
    %114 = vmatpush1.msra.mxu0 0.0
    %115 = vmatprep.subr.mxu0 0.0
    %116 = vmatpush1.msra.mxu0 0.0
    %117 = vmatprep.subr.mxu0 0.0
    %118 = vmatpush1.msra.mxu0 0.0
    %119 = vmatprep.subr.mxu0 0.0
    %120 = vmatpush1.msra.mxu0 0.0
    %121 = vmatprep.subr.mxu0 0.0
    %122 = vmatpush1.msra.mxu0 0.0
    %123 = vmatprep.subr.mxu0 0.0
    %124 = vmatpush1.msra.mxu0 0.0
    %125 = vmatprep.subr.mxu0 0.0
    %126 = vmatpush1.msra.mxu0 0.0
    %127 = vmatprep.subr.mxu0 0.0
    %128 = vmatpush1.msra.mxu0 0.0
    %129 = vmatprep.subr.mxu0 0.0
    %130 = vmatpush1.msra.mxu0 0.0
    %131 = vmatprep.subr.mxu0 0.0
    %132 = vmatpush1.msra.mxu0 0.0
    %133 = vmatprep.subr.mxu0 0.0
    %134 = vmatpush1.msra.mxu0 0.0
    %135 = vmatprep.mubr.f32.mxu0 %v66
    %136 = vmatmul.mubr.f32.gmra.mrb[0].mxu0 %v40
    %v137 = vpop.f32.mrb[0].mxu0
    %v138 = vadd.f32 0.0, %v137
    %v139 = vpop.f32.mrb[0].mxu0
    %140 = vmatprep.mubr.f32.mxu0 %v69
    %141 = vmatmul.mubr.f32.gmra.mrb[0].mxu0 %v42
    %v142 = vpop.f32.mrb[0].mxu0
    %v143 = vadd.f32 0.0, %v142
    %v144 = vpop.f32.mrb[0].mxu0
    %145 = vdwg.mxu0
    %s146 = scalar_lea.vmem [#allocation5], 160
    %v147 = vld [vmem:[%s146] sm:$0xff]
    %v148 = vld [vmem:[%s146 + $0x8] sm:$0xff]
    %v149 = vld [vmem:[%s146 + $0x10] sm:$0xff]
    %v150 = vld [vmem:[%s146 + $0x18] sm:$0xff]
    %v151 = vld [vmem:[%s146 + $0x20] sm:$0xff]
    %v152 = vld [vmem:[%s146 + $0x28] sm:$0xff]
    %v153 = vld [vmem:[%s146 + $0x30] sm:$0xff]
    %v154 = vld [vmem:[%s146 + $0x38] sm:$0xff]
    %v155 = vld [vmem:[%s146 + $0x40] sm:$0xff]
    %v156 = vld [vmem:[%s146 + $0x48] sm:$0xff]
    %v157 = vld [vmem:[%s146 + $0x50] sm:$0xff]
    %v158 = vld [vmem:[%s146 + $0x58] sm:$0xff]
    %v159 = vld [vmem:[%s146 + $0x60] sm:$0xff]
    %v160 = vld [vmem:[%s146 + $0x68] sm:$0xff]
    %v161 = vld [vmem:[%s146 + $0x70] sm:$0xff]
    %v162 = vld [vmem:[%s146 + $0x78] sm:$0xff]
    %v163 = vld [vmem:[%s146 + $0x80] sm:$0xff]
    %v164 = vld [vmem:[%s146 + $0x88] sm:$0xff]
    %v165 = vld [vmem:[%s146 + $0x90] sm:$0xff]
    %v166 = vld [vmem:[%s146 + $0x98] sm:$0xff]
    %167 = vmatprep.subr.mxu0 0.0
    %168 = vmatpush1.msra.mxu0 %v147
    %169 = vmatprep.subr.mxu0 0.0
    %170 = vmatpush1.msra.mxu0 %v148
    %171 = vmatprep.subr.mxu0 0.0
    %172 = vmatpush1.msra.mxu0 %v149
    %173 = vmatprep.subr.mxu0 0.0
    %174 = vmatpush1.msra.mxu0 %v150
    %175 = vmatprep.subr.mxu0 0.0
    %176 = vmatpush1.msra.mxu0 %v151
    %177 = vmatprep.subr.mxu0 0.0
    %178 = vmatpush1.msra.mxu0 %v152
    %179 = vmatprep.subr.mxu0 0.0
    %180 = vmatpush1.msra.mxu0 %v153
    %181 = vmatprep.subr.mxu0 0.0
    %182 = vmatpush1.msra.mxu0 %v154
    %183 = vmatprep.subr.mxu0 0.0
    %184 = vmatpush1.msra.mxu0 %v155
    %185 = vmatprep.subr.mxu0 0.0
    %186 = vmatpush1.msra.mxu0 %v156
    %187 = vmatprep.subr.mxu0 0.0
    %188 = vmatpush1.msra.mxu0 %v157
    %189 = vmatprep.subr.mxu0 0.0
    %190 = vmatpush1.msra.mxu0 %v158
    %191 = vmatprep.subr.mxu0 0.0
    %192 = vmatpush1.msra.mxu0 %v159
    %193 = vmatprep.subr.mxu0 0.0
    %194 = vmatpush1.msra.mxu0 %v160
    %195 = vmatprep.subr.mxu0 0.0
    %196 = vmatpush1.msra.mxu0 %v161
    %197 = vmatprep.subr.mxu0 0.0
    %198 = vmatpush1.msra.mxu0 %v162
    %199 = vmatprep.subr.mxu0 0.0
    %200 = vmatpush1.msra.mxu0 %v163
    %201 = vmatprep.subr.mxu0 0.0
    %202 = vmatpush1.msra.mxu0 %v164
    %203 = vmatprep.subr.mxu0 0.0
    %204 = vmatpush1.msra.mxu0 %v165
    %205 = vmatprep.subr.mxu0 0.0
    %206 = vmatpush1.msra.mxu0 %v166
    %207 = vmatprep.subr.mxu0 0.0
    %208 = vmatpush1.msra.mxu0 0.0
    %209 = vmatprep.subr.mxu0 0.0
    %210 = vmatpush1.msra.mxu0 0.0
    %211 = vmatprep.subr.mxu0 0.0
    %212 = vmatpush1.msra.mxu0 0.0
    %213 = vmatprep.subr.mxu0 0.0
    %214 = vmatpush1.msra.mxu0 0.0
    %215 = vmatprep.subr.mxu0 0.0
    %216 = vmatpush1.msra.mxu0 0.0
    %217 = vmatprep.subr.mxu0 0.0
    %218 = vmatpush1.msra.mxu0 0.0
    %219 = vmatprep.subr.mxu0 0.0
    %220 = vmatpush1.msra.mxu0 0.0
    %221 = vmatprep.subr.mxu0 0.0
    %222 = vmatpush1.msra.mxu0 0.0
    %223 = vmatprep.subr.mxu0 0.0
    %224 = vmatpush1.msra.mxu0 0.0
    %225 = vmatprep.subr.mxu0 0.0
    %226 = vmatpush1.msra.mxu0 0.0
    %227 = vmatprep.subr.mxu0 0.0
    %228 = vmatpush1.msra.mxu0 0.0
    %229 = vmatprep.subr.mxu0 0.0
    %230 = vmatpush1.msra.mxu0 0.0
    %231 = vmatprep.mubr.f32.mxu0 %v66
    %232 = vmatmul.mubr.f32.gmra.mrb[0].mxu0 %v40
    %v233 = vpop.f32.mrb[0].mxu0
    %v234 = vadd.f32 0.0, %v233
    %v235 = vpop.f32.mrb[0].mxu0
    %236 = vmatprep.mubr.f32.mxu0 %v69
    %237 = vmatmul.mubr.f32.gmra.mrb[0].mxu0 %v42
    %v238 = vpop.f32.mrb[0].mxu0
    %v239 = vadd.f32 0.0, %v238
    %v240 = vpop.f32.mrb[0].mxu0
    %241 = vdwg.mxu0
    %s242 = scalar_lea.vmem [#allocation5], 320
    %v243 = vld [vmem:[%s242] sm:$0xff]
    %v244 = vld [vmem:[%s242 + $0x8] sm:$0xff]
    %v245 = vld [vmem:[%s242 + $0x10] sm:$0xff]
    %v246 = vld [vmem:[%s242 + $0x18] sm:$0xff]
    %v247 = vld [vmem:[%s242 + $0x20] sm:$0xff]
    %v248 = vld [vmem:[%s242 + $0x28] sm:$0xff]
    %v249 = vld [vmem:[%s242 + $0x30] sm:$0xff]
    %v250 = vld [vmem:[%s242 + $0x38] sm:$0xff]
    %v251 = vld [vmem:[%s242 + $0x40] sm:$0xff]
    %v252 = vld [vmem:[%s242 + $0x48] sm:$0xff]
    %v253 = vld [vmem:[%s242 + $0x50] sm:$0xff]
    %v254 = vld [vmem:[%s242 + $0x58] sm:$0xff]
    %v255 = vld [vmem:[%s242 + $0x60] sm:$0xff]
    %v256 = vld [vmem:[%s242 + $0x68] sm:$0xff]
    %v257 = vld [vmem:[%s242 + $0x70] sm:$0xff]
    %v258 = vld [vmem:[%s242 + $0x78] sm:$0xff]
    %v259 = vld [vmem:[%s242 + $0x80] sm:$0xff]
    %v260 = vld [vmem:[%s242 + $0x88] sm:$0xff]
    %v261 = vld [vmem:[%s242 + $0x90] sm:$0xff]
    %v262 = vld [vmem:[%s242 + $0x98] sm:$0xff]
    %263 = vmatprep.subr.mxu0 0.0
    %264 = vmatpush1.msra.mxu0 %v243
    %265 = vmatprep.subr.mxu0 0.0
    %266 = vmatpush1.msra.mxu0 %v244
    %267 = vmatprep.subr.mxu0 0.0
    %268 = vmatpush1.msra.mxu0 %v245
    %269 = vmatprep.subr.mxu0 0.0
    %270 = vmatpush1.msra.mxu0 %v246
    %271 = vmatprep.subr.mxu0 0.0
    %272 = vmatpush1.msra.mxu0 %v247
    %273 = vmatprep.subr.mxu0 0.0
    %274 = vmatpush1.msra.mxu0 %v248
    %275 = vmatprep.subr.mxu0 0.0
    %276 = vmatpush1.msra.mxu0 %v249
    %277 = vmatprep.subr.mxu0 0.0
    %278 = vmatpush1.msra.mxu0 %v250
    %279 = vmatprep.subr.mxu0 0.0
    %280 = vmatpush1.msra.mxu0 %v251
    %281 = vmatprep.subr.mxu0 0.0
    %282 = vmatpush1.msra.mxu0 %v252
    %283 = vmatprep.subr.mxu0 0.0
    %284 = vmatpush1.msra.mxu0 %v253
    %285 = vmatprep.subr.mxu0 0.0
    %286 = vmatpush1.msra.mxu0 %v254
    %287 = vmatprep.subr.mxu0 0.0
    %288 = vmatpush1.msra.mxu0 %v255
    %289 = vmatprep.subr.mxu0 0.0
    %290 = vmatpush1.msra.mxu0 %v256
    %291 = vmatprep.subr.mxu0 0.0
    %292 = vmatpush1.msra.mxu0 %v257
    %293 = vmatprep.subr.mxu0 0.0
    %294 = vmatpush1.msra.mxu0 %v258
    %295 = vmatprep.subr.mxu0 0.0
    %296 = vmatpush1.msra.mxu0 %v259
    %297 = vmatprep.subr.mxu0 0.0
    %298 = vmatpush1.msra.mxu0 %v260
    %299 = vmatprep.subr.mxu0 0.0
    %300 = vmatpush1.msra.mxu0 %v261
    %301 = vmatprep.subr.mxu0 0.0
    %302 = vmatpush1.msra.mxu0 %v262
    %303 = vmatprep.subr.mxu0 0.0
    %304 = vmatpush1.msra.mxu0 0.0
    %305 = vmatprep.subr.mxu0 0.0
    %306 = vmatpush1.msra.mxu0 0.0
    %307 = vmatprep.subr.mxu0 0.0
    %308 = vmatpush1.msra.mxu0 0.0
    %309 = vmatprep.subr.mxu0 0.0
    %310 = vmatpush1.msra.mxu0 0.0
    %311 = vmatprep.subr.mxu0 0.0
    %312 = vmatpush1.msra.mxu0 0.0
    %313 = vmatprep.subr.mxu0 0.0
    %314 = vmatpush1.msra.mxu0 0.0
    %315 = vmatprep.subr.mxu0 0.0
    %316 = vmatpush1.msra.mxu0 0.0
    %317 = vmatprep.subr.mxu0 0.0
    %318 = vmatpush1.msra.mxu0 0.0
    %319 = vmatprep.subr.mxu0 0.0
    %320 = vmatpush1.msra.mxu0 0.0
    %321 = vmatprep.subr.mxu0 0.0
    %322 = vmatpush1.msra.mxu0 0.0
    %323 = vmatprep.subr.mxu0 0.0
    %324 = vmatpush1.msra.mxu0 0.0
    %325 = vmatprep.subr.mxu0 0.0
    %326 = vmatpush1.msra.mxu0 0.0
    %327 = vmatprep.mubr.f32.mxu0 %v66
    %328 = vmatmul.mubr.f32.gmra.mrb[0].mxu0 %v40
    %v329 = vpop.f32.mrb[0].mxu0
    %v330 = vadd.f32 0.0, %v329
    %v331 = vpop.f32.mrb[0].mxu0
    %332 = vmatprep.mubr.f32.mxu0 %v69
    %333 = vmatmul.mubr.f32.gmra.mrb[0].mxu0 %v42
    %v334 = vpop.f32.mrb[0].mxu0
    %v335 = vadd.f32 0.0, %v334
    %v336 = vpop.f32.mrb[0].mxu0
    %337 = vdwg.mxu0
    %s338 = scalar_lea.vmem [#allocation5], 480
    %v339 = vld [vmem:[%s338] sm:$0xff]
    %v340 = vld [vmem:[%s338 + $0x8] sm:$0xff]
    %v341 = vld [vmem:[%s338 + $0x10] sm:$0xff]
    %v342 = vld [vmem:[%s338 + $0x18] sm:$0xff]
    %v343 = vld [vmem:[%s338 + $0x20] sm:$0xff]
    %v344 = vld [vmem:[%s338 + $0x28] sm:$0xff]
    %v345 = vld [vmem:[%s338 + $0x30] sm:$0xff]
    %v346 = vld [vmem:[%s338 + $0x38] sm:$0xff]
    %v347 = vld [vmem:[%s338 + $0x40] sm:$0xff]
    %v348 = vld [vmem:[%s338 + $0x48] sm:$0xff]
    %v349 = vld [vmem:[%s338 + $0x50] sm:$0xff]
    %v350 = vld [vmem:[%s338 + $0x58] sm:$0xff]
    %v351 = vld [vmem:[%s338 + $0x60] sm:$0xff]
    %v352 = vld [vmem:[%s338 + $0x68] sm:$0xff]
    %v353 = vld [vmem:[%s338 + $0x70] sm:$0xff]
    %v354 = vld [vmem:[%s338 + $0x78] sm:$0xff]
    %v355 = vld [vmem:[%s338 + $0x80] sm:$0xff]
    %v356 = vld [vmem:[%s338 + $0x88] sm:$0xff]
    %v357 = vld [vmem:[%s338 + $0x90] sm:$0xff]
    %v358 = vld [vmem:[%s338 + $0x98] sm:$0xff]
    %359 = vmatprep.subr.mxu0 0.0
    %360 = vmatpush1.msra.mxu0 %v339
    %361 = vmatprep.subr.mxu0 0.0
    %362 = vmatpush1.msra.mxu0 %v340
    %363 = vmatprep.subr.mxu0 0.0
    %364 = vmatpush1.msra.mxu0 %v341
    %365 = vmatprep.subr.mxu0 0.0
    %366 = vmatpush1.msra.mxu0 %v342
    %367 = vmatprep.subr.mxu0 0.0
    %368 = vmatpush1.msra.mxu0 %v343
    %369 = vmatprep.subr.mxu0 0.0
    %370 = vmatpush1.msra.mxu0 %v344
    %371 = vmatprep.subr.mxu0 0.0
    %372 = vmatpush1.msra.mxu0 %v345
    %373 = vmatprep.subr.mxu0 0.0
    %374 = vmatpush1.msra.mxu0 %v346
    %375 = vmatprep.subr.mxu0 0.0
    %376 = vmatpush1.msra.mxu0 %v347
    %377 = vmatprep.subr.mxu0 0.0
    %378 = vmatpush1.msra.mxu0 %v348
    %379 = vmatprep.subr.mxu0 0.0
    %380 = vmatpush1.msra.mxu0 %v349
    %381 = vmatprep.subr.mxu0 0.0
    %382 = vmatpush1.msra.mxu0 %v350
    %383 = vmatprep.subr.mxu0 0.0
    %384 = vmatpush1.msra.mxu0 %v351
    %385 = vmatprep.subr.mxu0 0.0
    %386 = vmatpush1.msra.mxu0 %v352
    %387 = vmatprep.subr.mxu0 0.0
    %388 = vmatpush1.msra.mxu0 %v353
    %389 = vmatprep.subr.mxu0 0.0
    %390 = vmatpush1.msra.mxu0 %v354
    %391 = vmatprep.subr.mxu0 0.0
    %392 = vmatpush1.msra.mxu0 %v355
    %393 = vmatprep.subr.mxu0 0.0
    %394 = vmatpush1.msra.mxu0 %v356
    %395 = vmatprep.subr.mxu0 0.0
    %396 = vmatpush1.msra.mxu0 %v357
    %397 = vmatprep.subr.mxu0 0.0
    %398 = vmatpush1.msra.mxu0 %v358
    %399 = vmatprep.subr.mxu0 0.0
    %400 = vmatpush1.msra.mxu0 0.0
    %401 = vmatprep.subr.mxu0 0.0
    %402 = vmatpush1.msra.mxu0 0.0
    %403 = vmatprep.subr.mxu0 0.0
    %404 = vmatpush1.msra.mxu0 0.0
    %405 = vmatprep.subr.mxu0 0.0
    %406 = vmatpush1.msra.mxu0 0.0
    %407 = vmatprep.subr.mxu0 0.0
    %408 = vmatpush1.msra.mxu0 0.0
    %409 = vmatprep.subr.mxu0 0.0
    %410 = vmatpush1.msra.mxu0 0.0
    %411 = vmatprep.subr.mxu0 0.0
    %412 = vmatpush1.msra.mxu0 0.0
    %413 = vmatprep.subr.mxu0 0.0
    %414 = vmatpush1.msra.mxu0 0.0
    %415 = vmatprep.subr.mxu0 0.0
    %416 = vmatpush1.msra.mxu0 0.0
    %417 = vmatprep.subr.mxu0 0.0
    %418 = vmatpush1.msra.mxu0 0.0
    %419 = vmatprep.subr.mxu0 0.0
    %420 = vmatpush1.msra.mxu0 0.0
    %421 = vmatprep.subr.mxu0 0.0
    %422 = vmatpush1.msra.mxu0 0.0
    %423 = vmatprep.mubr.f32.mxu0 %v66
    %424 = vmatmul.mubr.f32.gmra.mrb[0].mxu0 %v40
    %v425 = vpop.f32.mrb[0].mxu0
    %v426 = vadd.f32 0.0, %v425
    %v427 = vpop.f32.mrb[0].mxu0
    %428 = vmatprep.mubr.f32.mxu0 %v69
    %429 = vmatmul.mubr.f32.gmra.mrb[0].mxu0 %v42
    %v430 = vpop.f32.mrb[0].mxu0
    %v431 = vadd.f32 0.0, %v430
    %v432 = vpop.f32.mrb[0].mxu0
    %433 = vdwg.mxu0
    %v434 = vmax.f32 %v138, %v234
    %v435 = vmax.f32 %v143, %v239
    %v436 = vmax.f32 %v330, %v426
    %v437 = vmax.f32 %v335, %v431
    %v438 = vmax.f32 %v434, %v436
    %v439 = vmax.f32 %v435, %v437
    %v440 = vmax.f32 %v438, 0.0
    %v441 = vmax.f32 %v439, 0.0
    %442 = vst [vmem:[#allocation7] sm:$0xff] %v440
    %443 = vst [vmem:[#allocation7 + $0x8] sm:$0xff] %v441
    // Predicated region
    $region18: #{net_forward.4} parent=1 // pred_check
      _
    $region19: #{net_forward.4} parent=1 // pred_check_branch
      %445 = sbr.rel (0) target = $region21
    $region20: #{net_forward.4} parent=1 // pred_region
      %s447 = ssub.s32 256, 256
      %448 = vsyncadd [#allocation4], %s447
      %s449 = sshll.u32 [#allocation7], 4
      %s450 = int_to_ptr.vmem [resolvable:$true] %s449
      %455 = dma.vmem_to_hbm [thread:$0]  %s450, 256, %s2, [#allocation4], 128, 128, 8
    $region21: #{net_forward.4} parent=1 // pred_fallthru
      _
    // Predicated region
    $region22: #{net_forward.4} parent=1 // pred_check
      _
    $region23: #{net_forward.4} parent=1 // pred_check_branch
      %457 = sbr.rel (0) target = $region25
    $region24: #{net_forward.4} parent=1 // pred_region
      %458 = dma.done [#allocation4], 256
    $region25: #{net_forward.4} parent=1 // pred_fallthru
      _
    %459 = vsyncpa [#allocation3], 1
    %460 = vsyncpa [#allocation6], 1
    %461 = vsyncpa [#allocation4], 1

// kernel: net_forward.5
$region0: #{net_forward.5}
  #allocation0 [shape = 'u32[]', space=smem, size = 0x4, offset = 0x4, fixed_abs, tag = 'smem constant byte address 0x4 - core index']
  #allocation1 [shape = 'u32[144,128]{1,0:T(1,128)}', space=vmem, size = 0x12000, scoped, tag = 'internal scratch']
  %s0 = inlined_call_operand.hbm [shape: f32[16,512], index: 0, kind: input, shape index: {}]
  %s1 = inlined_call_operand.hbm [shape: f32[512,128], index: 1, kind: input, shape index: {}]
  %s2 = inlined_call_operand.hbm [shape: f32[128,128], index: 2, kind: input, shape index: {}]
  %s3 = inlined_call_operand.hbm [shape: f32[128,128], index: 3, kind: input, shape index: {}]
  %s4 = inlined_call_operand.hbm [shape: f32[16,128], index: 4, kind: output, shape index: {}]
  %s5 = sld [smem:[#allocation0]]
  $region42: #{net_forward.5} parent=0
    _
  %s7 = ssub.s32 1, %s5
  %s8 = scalar_select 0, %s7, %s5
  $region1: #{net_forward.5} parent=0
    #allocation2 [shape = 'u8[32768]{0}', space=vmem, size = 0x8000, scoped, tag = 'input window, operand 0, single buffered']
    #allocation3 [shape = 's32[1]{0}', space=sflag, size = 0x4, scoped, tag = 'scoped memory for net_forward.5']
    #allocation4 [shape = 's32[1]{0}', space=sflag, size = 0x4, scoped, tag = 'scoped memory for net_forward.5']
    #allocation5 [shape = 'u8[262144]{0}', space=vmem, size = 0x40000, scoped, tag = 'input window, operand 1, single buffered']
    #allocation6 [shape = 's32[1]{0}', space=sflag, size = 0x4, scoped, tag = 'scoped memory for net_forward.5']
    #allocation7 [shape = 'u8[65536]{0}', space=vmem, size = 0x10000, scoped, tag = 'input window, operand 2, single buffered']
    #allocation8 [shape = 'u8[65536]{0}', space=vmem, size = 0x10000, scoped, tag = 'input window, operand 3, single buffered']
    #allocation9 [shape = 's32[1]{0}', space=sflag, size = 0x4, scoped, tag = 'scoped memory for net_forward.5']
    #allocation10 [shape = 'u8[8192]{0}', space=vmem, size = 0x2000, scoped, tag = 'output window, operand 0, single buffered']
    %9 = vsyncpa [#allocation3], 0
    %10 = vsyncpa [#allocation6], 0
    %11 = vsyncpa [#allocation9], 0
    %12 = vsyncpa [#allocation4], 0
    // Predicated region
    $region2: #{net_forward.5} parent=1 // pred_check
      _
    $region3: #{net_forward.5} parent=1 // pred_check_branch
      %14 = sbr.rel (0) target = $region5
    $region4: #{net_forward.5} parent=1 // pred_region
      %s16 = ssub.s32 1024, 1024
      %17 = vsyncadd [#allocation3], %s16
      %s18 = sshll.u32 [#allocation2], 4
      %s19 = int_to_ptr.vmem [resolvable:$true] %s18
      %24 = dma.hbm_to_vmem [thread:$0]  %s0, 1024, %s19, [#allocation3], 512, 512, 32
    $region5: #{net_forward.5} parent=1 // pred_fallthru
      _
    // Predicated region
    $region6: #{net_forward.5} parent=1 // pred_check
      _
    $region7: #{net_forward.5} parent=1 // pred_check_branch
      %26 = sbr.rel (0) target = $region9
    $region8: #{net_forward.5} parent=1 // pred_region
      %s28 = ssub.s32 8192, 8192
      %29 = vsyncadd [#allocation6], %s28
      %s30 = sshll.u32 [#allocation5], 4
      %s31 = int_to_ptr.vmem [resolvable:$true] %s30
      %36 = dma.hbm_to_vmem [thread:$0]  %s1, 8192, %s31, [#allocation6], 128, 128, 8
    $region9: #{net_forward.5} parent=1 // pred_fallthru
      _
    // Predicated region
    $region10: #{net_forward.5} parent=1 // pred_check
      _
    $region11: #{net_forward.5} parent=1 // pred_check_branch
      %38 = sbr.rel (0) target = $region13
    $region12: #{net_forward.5} parent=1 // pred_region
      %s40 = ssub.s32 2048, 2048
      %41 = vsyncadd [#allocation6], %s40
      %s42 = sshll.u32 [#allocation7], 4
      %s43 = int_to_ptr.vmem [resolvable:$true] %s42
      %48 = dma.hbm_to_vmem [thread:$0]  %s2, 2048, %s43, [#allocation6], 128, 128, 8
    $region13: #{net_forward.5} parent=1 // pred_fallthru
      _
    // Predicated region
    $region14: #{net_forward.5} parent=1 // pred_check
      _
    $region15: #{net_forward.5} parent=1 // pred_check_branch
      %50 = sbr.rel (0) target = $region17
    $region16: #{net_forward.5} parent=1 // pred_region
      %s52 = ssub.s32 2048, 2048
      %53 = vsyncadd [#allocation9], %s52
      %s54 = sshll.u32 [#allocation8], 4
      %s55 = int_to_ptr.vmem [resolvable:$true] %s54
      %60 = dma.hbm_to_vmem [thread:$0]  %s3, 2048, %s55, [#allocation9], 128, 128, 8
    $region17: #{net_forward.5} parent=1 // pred_fallthru
      _
    // Predicated region
    $region18: #{net_forward.5} parent=1 // pred_check
      _
    $region19: #{net_forward.5} parent=1 // pred_check_branch
      %62 = sbr.rel (0) target = $region21
    $region20: #{net_forward.5} parent=1 // pred_region
      %63 = dma.done [#allocation3], 1024
    $region21: #{net_forward.5} parent=1 // pred_fallthru
      _
    // Predicated region
    $region22: #{net_forward.5} parent=1 // pred_check
      _
    $region23: #{net_forward.5} parent=1 // pred_check_branch
      %65 = sbr.rel (0) target = $region25
    $region24: #{net_forward.5} parent=1 // pred_region
      %66 = dma.done [#allocation6], 8192
    $region25: #{net_forward.5} parent=1 // pred_fallthru
      _
    // Predicated region
    $region26: #{net_forward.5} parent=1 // pred_check
      _
    $region27: #{net_forward.5} parent=1 // pred_check_branch
      %68 = sbr.rel (0) target = $region29
    $region28: #{net_forward.5} parent=1 // pred_region
      %69 = dma.done [#allocation6], 2048
    $region29: #{net_forward.5} parent=1 // pred_fallthru
      _
    // Predicated region
    $region30: #{net_forward.5} parent=1 // pred_check
      _
    $region31: #{net_forward.5} parent=1 // pred_check_branch
      %71 = sbr.rel (0) target = $region33
    $region32: #{net_forward.5} parent=1 // pred_region
      %72 = dma.done [#allocation9], 2048
    $region33: #{net_forward.5} parent=1 // pred_fallthru
      _
    %v73 = vld [vmem:[#allocation2] sm:$0xff]
    %v74 = vld [vmem:[#allocation2 + $0x8] sm:$0xff]
    %v75 = vld [vmem:[#allocation2 + $0x10] sm:$0xff]
    %v76 = vld [vmem:[#allocation2 + $0x18] sm:$0xff]
    %v77 = vld [vmem:[#allocation2 + $0x20] sm:$0xff]
    %v78 = vld [vmem:[#allocation2 + $0x28] sm:$0xff]
    %v79 = vld [vmem:[#allocation2 + $0x30] sm:$0xff]
    %v80 = vld [vmem:[#allocation2 + $0x38] sm:$0xff]
    %v81 = vld [vmem:[#allocation5] sm:$0xff]
    %v82 = vld [vmem:[#allocation5 + $0x8] sm:$0xff]
    %v83 = vld [vmem:[#allocation5 + $0x10] sm:$0xff]
    %v84 = vld [vmem:[#allocation5 + $0x18] sm:$0xff]
    %v85 = vld [vmem:[#allocation5 + $0x20] sm:$0xff]
    %v86 = vld [vmem:[#allocation5 + $0x28] sm:$0xff]
    %v87 = vld [vmem:[#allocation5 + $0x30] sm:$0xff]
    %v88 = vld [vmem:[#allocation5 + $0x38] sm:$0xff]
    %v89 = vld [vmem:[#allocation5 + $0x40] sm:$0xff]
    %v90 = vld [vmem:[#allocation5 + $0x48] sm:$0xff]
    %v91 = vld [vmem:[#allocation5 + $0x50] sm:$0xff]
    %v92 = vld [vmem:[#allocation5 + $0x58] sm:$0xff]
    %v93 = vld [vmem:[#allocation5 + $0x60] sm:$0xff]
    %v94 = vld [vmem:[#allocation5 + $0x68] sm:$0xff]
    %v95 = vld [vmem:[#allocation5 + $0x70] sm:$0xff]
    %v96 = vld [vmem:[#allocation5 + $0x78] sm:$0xff]
    %v97 = vld [vmem:[#allocation5 + $0x80] sm:$0xff]
    %v98 = vld [vmem:[#allocation5 + $0x88] sm:$0xff]
    %v99 = vld [vmem:[#allocation5 + $0x90] sm:$0xff]
    %v100 = vld [vmem:[#allocation5 + $0x98] sm:$0xff]
    %v101 = vld [vmem:[#allocation5 + $0xa0] sm:$0xff]
    %v102 = vld [vmem:[#allocation5 + $0xa8] sm:$0xff]
    %v103 = vld [vmem:[#allocation5 + $0xb0] sm:$0xff]
    %v104 = vld [vmem:[#allocation5 + $0xb8] sm:$0xff]
    %v105 = vld [vmem:[#allocation5 + $0xc0] sm:$0xff]
    %v106 = vld [vmem:[#allocation5 + $0xc8] sm:$0xff]
    %v107 = vld [vmem:[#allocation5 + $0xd0] sm:$0xff]
    %v108 = vld [vmem:[#allocation5 + $0xd8] sm:$0xff]
    %v109 = vld [vmem:[#allocation5 + $0xe0] sm:$0xff]
    %v110 = vld [vmem:[#allocation5 + $0xe8] sm:$0xff]
    %v111 = vld [vmem:[#allocation5 + $0xf0] sm:$0xff]
    %v112 = vld [vmem:[#allocation5 + $0xf8] sm:$0xff]
    %v113 = vld [vmem:[#allocation5 + $0x100] sm:$0xff]
    %v114 = vld [vmem:[#allocation5 + $0x108] sm:$0xff]
    %v115 = vld [vmem:[#allocation5 + $0x110] sm:$0xff]
    %v116 = vld [vmem:[#allocation5 + $0x118] sm:$0xff]
    %v117 = vld [vmem:[#allocation5 + $0x120] sm:$0xff]
    %v118 = vld [vmem:[#allocation5 + $0x128] sm:$0xff]
    %v119 = vld [vmem:[#allocation5 + $0x130] sm:$0xff]
    %v120 = vld [vmem:[#allocation5 + $0x138] sm:$0xff]
    %v121 = vld [vmem:[#allocation5 + $0x140] sm:$0xff]
    %v122 = vld [vmem:[#allocation5 + $0x148] sm:$0xff]
    %v123 = vld [vmem:[#allocation5 + $0x150] sm:$0xff]
    %v124 = vld [vmem:[#allocation5 + $0x158] sm:$0xff]
    %v125 = vld [vmem:[#allocation5 + $0x160] sm:$0xff]
    %v126 = vld [vmem:[#allocation5 + $0x168] sm:$0xff]
    %v127 = vld [vmem:[#allocation5 + $0x170] sm:$0xff]
    %v128 = vld [vmem:[#allocation5 + $0x178] sm:$0xff]
    %v129 = vld [vmem:[#allocation5 + $0x180] sm:$0xff]
    %v130 = vld [vmem:[#allocation5 + $0x188] sm:$0xff]
    %v131 = vld [vmem:[#allocation5 + $0x190] sm:$0xff]
    %v132 = vld [vmem:[#allocation5 + $0x198] sm:$0xff]
    %v133 = vld [vmem:[#allocation5 + $0x1a0] sm:$0xff]
    %v134 = vld [vmem:[#allocation5 + $0x1a8] sm:$0xff]
    %v135 = vld [vmem:[#allocation5 + $0x1b0] sm:$0xff]
    %v136 = vld [vmem:[#allocation5 + $0x1b8] sm:$0xff]
    %v137 = vld [vmem:[#allocation5 + $0x1c0] sm:$0xff]
    %v138 = vld [vmem:[#allocation5 + $0x1c8] sm:$0xff]
    %v139 = vld [vmem:[#allocation5 + $0x1d0] sm:$0xff]
    %v140 = vld [vmem:[#allocation5 + $0x1d8] sm:$0xff]
    %v141 = vld [vmem:[#allocation5 + $0x1e0] sm:$0xff]
    %v142 = vld [vmem:[#allocation5 + $0x1e8] sm:$0xff]
    %v143 = vld [vmem:[#allocation5 + $0x1f0] sm:$0xff]
    %v144 = vld [vmem:[#allocation5 + $0x1f8] sm:$0xff]
    %145 = vmatprep.subr.mxu0 0.0
    %146 = vmatpush1.msra.mxu0 %v81
    %147 = vmatprep.subr.mxu0 0.0
    %148 = vmatpush1.msra.mxu0 %v82
    %149 = vmatprep.subr.mxu0 0.0
    %150 = vmatpush1.msra.mxu0 %v83
    %151 = vmatprep.subr.mxu0 0.0
    %152 = vmatpush1.msra.mxu0 %v84
    %153 = vmatprep.subr.mxu0 0.0
    %154 = vmatpush1.msra.mxu0 %v85
    %155 = vmatprep.subr.mxu0 0.0
    %156 = vmatpush1.msra.mxu0 %v86
    %157 = vmatprep.subr.mxu0 0.0
    %158 = vmatpush1.msra.mxu0 %v87
    %159 = vmatprep.subr.mxu0 0.0
    %160 = vmatpush1.msra.mxu0 %v88
    %161 = vmatprep.subr.mxu0 0.0
    %162 = vmatpush1.msra.mxu0 %v89
    %163 = vmatprep.subr.mxu0 0.0
    %164 = vmatpush1.msra.mxu0 %v90
    %165 = vmatprep.subr.mxu0 0.0
    %166 = vmatpush1.msra.mxu0 %v91
    %167 = vmatprep.subr.mxu0 0.0
    %168 = vmatpush1.msra.mxu0 %v92
    %169 = vmatprep.subr.mxu0 0.0
    %170 = vmatpush1.msra.mxu0 %v93
    %171 = vmatprep.subr.mxu0 0.0
    %172 = vmatpush1.msra.mxu0 %v94
    %173 = vmatprep.subr.mxu0 0.0
    %174 = vmatpush1.msra.mxu0 %v95
    %175 = vmatprep.subr.mxu0 0.0
    %176 = vmatpush1.msra.mxu0 %v96
    %177 = vmatprep.subr.mxu0 0.0
    %178 = vmatpush1.msra.mxu0 %v97
    %179 = vmatprep.subr.mxu0 0.0
    %180 = vmatpush1.msra.mxu0 %v98
    %181 = vmatprep.subr.mxu0 0.0
    %182 = vmatpush1.msra.mxu0 %v99
    %183 = vmatprep.subr.mxu0 0.0
    %184 = vmatpush1.msra.mxu0 %v100
    %185 = vmatprep.subr.mxu0 0.0
    %186 = vmatpush1.msra.mxu0 %v101
    %187 = vmatprep.subr.mxu0 0.0
    %188 = vmatpush1.msra.mxu0 %v102
    %189 = vmatprep.subr.mxu0 0.0
    %190 = vmatpush1.msra.mxu0 %v103
    %191 = vmatprep.subr.mxu0 0.0
    %192 = vmatpush1.msra.mxu0 %v104
    %193 = vmatprep.subr.mxu0 0.0
    %194 = vmatpush1.msra.mxu0 %v105
    %195 = vmatprep.subr.mxu0 0.0
    %196 = vmatpush1.msra.mxu0 %v106
    %197 = vmatprep.subr.mxu0 0.0
    %198 = vmatpush1.msra.mxu0 %v107
    %199 = vmatprep.subr.mxu0 0.0
    %200 = vmatpush1.msra.mxu0 %v108
    %201 = vmatprep.subr.mxu0 0.0
    %202 = vmatpush1.msra.mxu0 %v109
    %203 = vmatprep.subr.mxu0 0.0
    %204 = vmatpush1.msra.mxu0 %v110
    %205 = vmatprep.subr.mxu0 0.0
    %206 = vmatpush1.msra.mxu0 %v111
    %207 = vmatprep.subr.mxu0 0.0
    %208 = vmatpush1.msra.mxu0 %v112
    %209 = vmatprep.mubr.f32.mxu0 %v74
    %210 = vmatmul.mubr.f32.gmra.mrb[0].mxu0 %v73
    %v211 = vpop.f32.mrb[0].mxu0
    %v212 = vadd.f32 0.0, %v211
    %v213 = vpop.f32.mrb[0].mxu0
    %214 = vmatprep.mubr.f32.mxu0 %v78
    %215 = vmatmul.mubr.f32.gmra.mrb[0].mxu0 %v77
    %v216 = vpop.f32.mrb[0].mxu0
    %v217 = vadd.f32 0.0, %v216
    %v218 = vpop.f32.mrb[0].mxu0
    %219 = vdwg.mxu0
    %220 = vmatprep.subr.mxu0 0.0
    %221 = vmatpush1.msra.mxu0 %v113
    %222 = vmatprep.subr.mxu0 0.0
    %223 = vmatpush1.msra.mxu0 %v114
    %224 = vmatprep.subr.mxu0 0.0
    %225 = vmatpush1.msra.mxu0 %v115
    %226 = vmatprep.subr.mxu0 0.0
    %227 = vmatpush1.msra.mxu0 %v116
    %228 = vmatprep.subr.mxu0 0.0
    %229 = vmatpush1.msra.mxu0 %v117
    %230 = vmatprep.subr.mxu0 0.0
    %231 = vmatpush1.msra.mxu0 %v118
    %232 = vmatprep.subr.mxu0 0.0
    %233 = vmatpush1.msra.mxu0 %v119
    %234 = vmatprep.subr.mxu0 0.0
    %235 = vmatpush1.msra.mxu0 %v120
    %236 = vmatprep.subr.mxu0 0.0
    %237 = vmatpush1.msra.mxu0 %v121
    %238 = vmatprep.subr.mxu0 0.0
    %239 = vmatpush1.msra.mxu0 %v122
    %240 = vmatprep.subr.mxu0 0.0
    %241 = vmatpush1.msra.mxu0 %v123
    %242 = vmatprep.subr.mxu0 0.0
    %243 = vmatpush1.msra.mxu0 %v124
    %244 = vmatprep.subr.mxu0 0.0
    %245 = vmatpush1.msra.mxu0 %v125
    %246 = vmatprep.subr.mxu0 0.0
    %247 = vmatpush1.msra.mxu0 %v126
    %248 = vmatprep.subr.mxu0 0.0
    %249 = vmatpush1.msra.mxu0 %v127
    %250 = vmatprep.subr.mxu0 0.0
    %251 = vmatpush1.msra.mxu0 %v128
    %252 = vmatprep.subr.mxu0 0.0
    %253 = vmatpush1.msra.mxu0 %v129
    %254 = vmatprep.subr.mxu0 0.0
    %255 = vmatpush1.msra.mxu0 %v130
    %256 = vmatprep.subr.mxu0 0.0
    %257 = vmatpush1.msra.mxu0 %v131
    %258 = vmatprep.subr.mxu0 0.0
    %259 = vmatpush1.msra.mxu0 %v132
    %260 = vmatprep.subr.mxu0 0.0
    %261 = vmatpush1.msra.mxu0 %v133
    %262 = vmatprep.subr.mxu0 0.0
    %263 = vmatpush1.msra.mxu0 %v134
    %264 = vmatprep.subr.mxu0 0.0
    %265 = vmatpush1.msra.mxu0 %v135
    %266 = vmatprep.subr.mxu0 0.0
    %267 = vmatpush1.msra.mxu0 %v136
    %268 = vmatprep.subr.mxu0 0.0
    %269 = vmatpush1.msra.mxu0 %v137
    %270 = vmatprep.subr.mxu0 0.0
    %271 = vmatpush1.msra.mxu0 %v138
    %272 = vmatprep.subr.mxu0 0.0
    %273 = vmatpush1.msra.mxu0 %v139
    %274 = vmatprep.subr.mxu0 0.0
    %275 = vmatpush1.msra.mxu0 %v140
    %276 = vmatprep.subr.mxu0 0.0
    %277 = vmatpush1.msra.mxu0 %v141
    %278 = vmatprep.subr.mxu0 0.0
    %279 = vmatpush1.msra.mxu0 %v142
    %280 = vmatprep.subr.mxu0 0.0
    %281 = vmatpush1.msra.mxu0 %v143
    %282 = vmatprep.subr.mxu0 0.0
    %283 = vmatpush1.msra.mxu0 %v144
    %284 = vmatprep.mubr.f32.mxu0 %v76
    %285 = vmatmul.mubr.f32.gmra.mrb[0].mxu0 %v75
    %v286 = vpop.f32.mrb[0].mxu0
    %v287 = vadd.f32 %v212, %v286
    %v288 = vpop.f32.mrb[0].mxu0
    %289 = vmatprep.mubr.f32.mxu0 %v80
    %290 = vmatmul.mubr.f32.gmra.mrb[0].mxu0 %v79
    %v291 = vpop.f32.mrb[0].mxu0
    %v292 = vadd.f32 %v217, %v291
    %v293 = vpop.f32.mrb[0].mxu0
    %294 = vdwg.mxu0
    %v295 = vmax.f32 %v287, 0.0
    %v296 = vmax.f32 %v292, 0.0
    %v297 = vld [vmem:[#allocation7] sm:$0xff]
    %v298 = vld [vmem:[#allocation7 + $0x8] sm:$0xff]
    %v299 = vld [vmem:[#allocation7 + $0x10] sm:$0xff]
    %v300 = vld [vmem:[#allocation7 + $0x18] sm:$0xff]
    %v301 = vld [vmem:[#allocation7 + $0x20] sm:$0xff]
    %v302 = vld [vmem:[#allocation7 + $0x28] sm:$0xff]
    %v303 = vld [vmem:[#allocation7 + $0x30] sm:$0xff]
    %v304 = vld [vmem:[#allocation7 + $0x38] sm:$0xff]
    %v305 = vld [vmem:[#allocation7 + $0x40] sm:$0xff]
    %v306 = vld [vmem:[#allocation7 + $0x48] sm:$0xff]
    %v307 = vld [vmem:[#allocation7 + $0x50] sm:$0xff]
    %v308 = vld [vmem:[#allocation7 + $0x58] sm:$0xff]
    %v309 = vld [vmem:[#allocation7 + $0x60] sm:$0xff]
    %v310 = vld [vmem:[#allocation7 + $0x68] sm:$0xff]
    %v311 = vld [vmem:[#allocation7 + $0x70] sm:$0xff]
    %v312 = vld [vmem:[#allocation7 + $0x78] sm:$0xff]
    %313 = vmatprep.subr.mxu0 0.0
    %314 = vmatpush1.msra.mxu0 %v297
    %315 = vmatprep.subr.mxu0 0.0
    %316 = vmatpush1.msra.mxu0 %v298
    %317 = vmatprep.subr.mxu0 0.0
    %318 = vmatpush1.msra.mxu0 %v299
    %319 = vmatprep.subr.mxu0 0.0
    %320 = vmatpush1.msra.mxu0 %v300
    %321 = vmatprep.subr.mxu0 0.0
    %322 = vmatpush1.msra.mxu0 %v301
    %323 = vmatprep.subr.mxu0 0.0
    %324 = vmatpush1.msra.mxu0 %v302
    %325 = vmatprep.subr.mxu0 0.0
    %326 = vmatpush1.msra.mxu0 %v303
    %327 = vmatprep.subr.mxu0 0.0
    %328 = vmatpush1.msra.mxu0 %v304
    %329 = vmatprep.subr.mxu0 0.0
    %330 = vmatpush1.msra.mxu0 %v305
    %331 = vmatprep.subr.mxu0 0.0
    %332 = vmatpush1.msra.mxu0 %v306
    %333 = vmatprep.subr.mxu0 0.0
    %334 = vmatpush1.msra.mxu0 %v307
    %335 = vmatprep.subr.mxu0 0.0
    %336 = vmatpush1.msra.mxu0 %v308
    %337 = vmatprep.subr.mxu0 0.0
    %338 = vmatpush1.msra.mxu0 %v309
    %339 = vmatprep.subr.mxu0 0.0
    %340 = vmatpush1.msra.mxu0 %v310
    %341 = vmatprep.subr.mxu0 0.0
    %342 = vmatpush1.msra.mxu0 %v311
    %343 = vmatprep.subr.mxu0 0.0
    %344 = vmatpush1.msra.mxu0 %v312
    %345 = vmatprep.subr.mxu0 0.0
    %346 = vmatpush1.msra.mxu0 0.0
    %347 = vmatprep.subr.mxu0 0.0
    %348 = vmatpush1.msra.mxu0 0.0
    %349 = vmatprep.subr.mxu0 0.0
    %350 = vmatpush1.msra.mxu0 0.0
    %351 = vmatprep.subr.mxu0 0.0
    %352 = vmatpush1.msra.mxu0 0.0
    %353 = vmatprep.subr.mxu0 0.0
    %354 = vmatpush1.msra.mxu0 0.0
    %355 = vmatprep.subr.mxu0 0.0
    %356 = vmatpush1.msra.mxu0 0.0
    %357 = vmatprep.subr.mxu0 0.0
    %358 = vmatpush1.msra.mxu0 0.0
    %359 = vmatprep.subr.mxu0 0.0
    %360 = vmatpush1.msra.mxu0 0.0
    %361 = vmatprep.subr.mxu0 0.0
    %362 = vmatpush1.msra.mxu0 0.0
    %363 = vmatprep.subr.mxu0 0.0
    %364 = vmatpush1.msra.mxu0 0.0
    %365 = vmatprep.subr.mxu0 0.0
    %366 = vmatpush1.msra.mxu0 0.0
    %367 = vmatprep.subr.mxu0 0.0
    %368 = vmatpush1.msra.mxu0 0.0
    %369 = vmatprep.subr.mxu0 0.0
    %370 = vmatpush1.msra.mxu0 0.0
    %371 = vmatprep.subr.mxu0 0.0
    %372 = vmatpush1.msra.mxu0 0.0
    %373 = vmatprep.subr.mxu0 0.0
    %374 = vmatpush1.msra.mxu0 0.0
    %375 = vmatprep.subr.mxu0 0.0
    %376 = vmatpush1.msra.mxu0 0.0
    %377 = vmatprep.mubr.f32.mxu0 0.0
    %378 = vmatmul.mubr.f32.gmra.mrb[0].mxu0 %v295
    %v379 = vpop.f32.mrb[0].mxu0
    %v380 = vadd.f32 0.0, %v379
    %v381 = vpop.f32.mrb[0].mxu0
    %382 = vmatprep.mubr.f32.mxu0 0.0
    %383 = vmatmul.mubr.f32.gmra.mrb[0].mxu0 %v296
    %v384 = vpop.f32.mrb[0].mxu0
    %v385 = vadd.f32 0.0, %v384
    %v386 = vpop.f32.mrb[0].mxu0
    %387 = vdwg.mxu0
    %v388 = vmax.f32 %v380, 0.0
    %v389 = vmax.f32 %v385, 0.0
    %v390 = vld [vmem:[#allocation8] sm:$0xff]
    %v391 = vld [vmem:[#allocation8 + $0x8] sm:$0xff]
    %v392 = vld [vmem:[#allocation8 + $0x10] sm:$0xff]
    %v393 = vld [vmem:[#allocation8 + $0x18] sm:$0xff]
    %v394 = vld [vmem:[#allocation8 + $0x20] sm:$0xff]
    %v395 = vld [vmem:[#allocation8 + $0x28] sm:$0xff]
    %v396 = vld [vmem:[#allocation8 + $0x30] sm:$0xff]
    %v397 = vld [vmem:[#allocation8 + $0x38] sm:$0xff]
    %v398 = vld [vmem:[#allocation8 + $0x40] sm:$0xff]
    %v399 = vld [vmem:[#allocation8 + $0x48] sm:$0xff]
    %v400 = vld [vmem:[#allocation8 + $0x50] sm:$0xff]
    %v401 = vld [vmem:[#allocation8 + $0x58] sm:$0xff]
    %v402 = vld [vmem:[#allocation8 + $0x60] sm:$0xff]
    %v403 = vld [vmem:[#allocation8 + $0x68] sm:$0xff]
    %v404 = vld [vmem:[#allocation8 + $0x70] sm:$0xff]
    %v405 = vld [vmem:[#allocation8 + $0x78] sm:$0xff]
    %406 = vmatprep.subr.mxu0 0.0
    %407 = vmatpush1.msra.mxu0 %v390
    %408 = vmatprep.subr.mxu0 0.0
    %409 = vmatpush1.msra.mxu0 %v391
    %410 = vmatprep.subr.mxu0 0.0
    %411 = vmatpush1.msra.mxu0 %v392
    %412 = vmatprep.subr.mxu0 0.0
    %413 = vmatpush1.msra.mxu0 %v393
    %414 = vmatprep.subr.mxu0 0.0
    %415 = vmatpush1.msra.mxu0 %v394
    %416 = vmatprep.subr.mxu0 0.0
    %417 = vmatpush1.msra.mxu0 %v395
    %418 = vmatprep.subr.mxu0 0.0
    %419 = vmatpush1.msra.mxu0 %v396
    %420 = vmatprep.subr.mxu0 0.0
    %421 = vmatpush1.msra.mxu0 %v397
    %422 = vmatprep.subr.mxu0 0.0
    %423 = vmatpush1.msra.mxu0 %v398
    %424 = vmatprep.subr.mxu0 0.0
    %425 = vmatpush1.msra.mxu0 %v399
    %426 = vmatprep.subr.mxu0 0.0
    %427 = vmatpush1.msra.mxu0 %v400
    %428 = vmatprep.subr.mxu0 0.0
    %429 = vmatpush1.msra.mxu0 %v401
    %430 = vmatprep.subr.mxu0 0.0
    %431 = vmatpush1.msra.mxu0 %v402
    %432 = vmatprep.subr.mxu0 0.0
    %433 = vmatpush1.msra.mxu0 %v403
    %434 = vmatprep.subr.mxu0 0.0
    %435 = vmatpush1.msra.mxu0 %v404
    %436 = vmatprep.subr.mxu0 0.0
    %437 = vmatpush1.msra.mxu0 %v405
    %438 = vmatprep.subr.mxu0 0.0
    %439 = vmatpush1.msra.mxu0 0.0
    %440 = vmatprep.subr.mxu0 0.0
    %441 = vmatpush1.msra.mxu0 0.0
    %442 = vmatprep.subr.mxu0 0.0
    %443 = vmatpush1.msra.mxu0 0.0
    %444 = vmatprep.subr.mxu0 0.0
    %445 = vmatpush1.msra.mxu0 0.0
    %446 = vmatprep.subr.mxu0 0.0
    %447 = vmatpush1.msra.mxu0 0.0
    %448 = vmatprep.subr.mxu0 0.0
    %449 = vmatpush1.msra.mxu0 0.0
    %450 = vmatprep.subr.mxu0 0.0
    %451 = vmatpush1.msra.mxu0 0.0
    %452 = vmatprep.subr.mxu0 0.0
    %453 = vmatpush1.msra.mxu0 0.0
    %454 = vmatprep.subr.mxu0 0.0
    %455 = vmatpush1.msra.mxu0 0.0
    %456 = vmatprep.subr.mxu0 0.0
    %457 = vmatpush1.msra.mxu0 0.0
    %458 = vmatprep.subr.mxu0 0.0
    %459 = vmatpush1.msra.mxu0 0.0
    %460 = vmatprep.subr.mxu0 0.0
    %461 = vmatpush1.msra.mxu0 0.0
    %462 = vmatprep.subr.mxu0 0.0
    %463 = vmatpush1.msra.mxu0 0.0
    %464 = vmatprep.subr.mxu0 0.0
    %465 = vmatpush1.msra.mxu0 0.0
    %466 = vmatprep.subr.mxu0 0.0
    %467 = vmatpush1.msra.mxu0 0.0
    %468 = vmatprep.subr.mxu0 0.0
    %469 = vmatpush1.msra.mxu0 0.0
    %470 = vmatprep.mubr.f32.mxu0 0.0
    %471 = vmatmul.mubr.f32.gmra.mrb[0].mxu0 %v388
    %v472 = vpop.f32.mrb[0].mxu0
    %v473 = vadd.f32 0.0, %v472
    %v474 = vpop.f32.mrb[0].mxu0
    %475 = vmatprep.mubr.f32.mxu0 0.0
    %476 = vmatmul.mubr.f32.gmra.mrb[0].mxu0 %v389
    %v477 = vpop.f32.mrb[0].mxu0
    %v478 = vadd.f32 0.0, %v477
    %v479 = vpop.f32.mrb[0].mxu0
    %480 = vdwg.mxu0
    %481 = vst [vmem:[#allocation10] sm:$0xff] %v473
    %482 = vst [vmem:[#allocation10 + $0x8] sm:$0xff] %v478
    // Predicated region
    $region34: #{net_forward.5} parent=1 // pred_check
      _
    $region35: #{net_forward.5} parent=1 // pred_check_branch
      %484 = sbr.rel (0) target = $region37
    $region36: #{net_forward.5} parent=1 // pred_region
      %s486 = ssub.s32 256, 256
      %487 = vsyncadd [#allocation4], %s486
      %s488 = sshll.u32 [#allocation10], 4
      %s489 = int_to_ptr.vmem [resolvable:$true] %s488
      %494 = dma.vmem_to_hbm [thread:$0]  %s489, 256, %s4, [#allocation4], 128, 128, 8
    $region37: #{net_forward.5} parent=1 // pred_fallthru
      _
    // Predicated region
    $region38: #{net_forward.5} parent=1 // pred_check
      _
    $region39: #{net_forward.5} parent=1 // pred_check_branch
      %496 = sbr.rel (0) target = $region41
    $region40: #{net_forward.5} parent=1 // pred_region
      %497 = dma.done [#allocation4], 256
    $region41: #{net_forward.5} parent=1 // pred_fallthru
      _
    %498 = vsyncpa [#allocation3], 1
    %499 = vsyncpa [#allocation6], 1
    %500 = vsyncpa [#allocation9], 1
    %501 = vsyncpa [#allocation4], 1

</llo_original>
